<compile_context>
chip_gen: v6e
topology: v6e:2x2x1
jax: 0.10.0
libtpu: 0.0.40
codegen_flags: <defaults>
</compile_context>

<pallas_src>
import functools

import jax
import jax.numpy as jnp
from jax import lax
from jax.experimental import pallas as pl
from jax.experimental.pallas import tpu as pltpu

KSIZE = 7
PAD = 3  # padding = 3 for kernel_size 7 (matches the PyTorch module)


def _vmem_capacity_bytes():
    """Physical VMEM of the local TPU; conservative fallback = v7x (64 MiB)."""
    try:
        cap = int(pltpu.get_tpu_info().vmem_capacity_bytes)
        if cap > 0:
            return cap
    except Exception:
        pass
    return 64 * 1024 * 1024


def _input_block_budget(vmem_cap):
    """Target bytes for one (multi-buffered) x block.

    Bigger blocks amortize the ~0.35us per-grid-step overhead against HBM DMA:
    128-MiB-VMEM parts (v5e/v6e) get 12 MiB blocks, 64-MiB parts (v7x) get 8 MiB.
    """
    if vmem_cap >= 96 * 1024 * 1024:
        return 12 * 1024 * 1024
    return 8 * 1024 * 1024


def _pick_channel_tile(tb, C, hw, itemsize, budget):
    """Channel tile: full C if it fits the budget, else a multiple of 8 dividing C."""
    bytes_per_c = tb * hw * itemsize
    if C * bytes_per_c <= budget:
        return C
    best = None
    t = 8
    while t < C:
        if C % t == 0 and t * bytes_per_c <= budget:
            best = t
        t += 8
    # TODO(synk): if even TC=8 blows the budget (huge H*W), an H-tiled conv with
    # a 3-row halo exchange would be needed; fall back to whole-C blocks for now.
    return best if best is not None else C


def _spatial_attention_kernel(x_ref, w_ref, col_ref, o_ref, macc_ref, *, H, W):
    # x_ref:    (TB, TC, HW) VMEM  -- lane-dense channel tile (x.dtype)
    # w_ref:    (7, 7)       SMEM  -- conv weights, scalar-indexed
    # col_ref:  (1, HW)      VMEM  -- precomputed (flat % W) column index map
    # o_ref:    (TB, HW)     VMEM  -- output block (revisited across c)
    # macc_ref: (TB, 1, HW)  VMEM scratch -- running channel max (x.dtype)
    HW = H * W
    c = pl.program_id(1)
    num_c = pl.num_programs(1)

    # ---- streaming channel max (every grid step) -----------------------------
    # keepdims keeps the result (TB, 1, HW): the sublane-reduce result of each
    # batch row stays in its own slab, so the hot loop never repacks TB into
    # sublanes (that relayout happens exactly once, in the epilogue below).
    tile_max = jnp.max(x_ref[...], axis=1, keepdims=True)

    @pl.when(c == 0)
    def _():
        macc_ref[...] = tile_max.astype(macc_ref.dtype)

    @pl.when(c > 0)
    def _():
        macc_ref[...] = jnp.maximum(macc_ref[...], tile_max.astype(macc_ref.dtype))

    # ---- 7x7 conv + sigmoid (only on the last channel step) ------------------
    @pl.when(c == num_c - 1)
    def _():
        m = macc_ref[...][:, 0, :].astype(jnp.float32)       # (TB, HW), one repack
        shape = m.shape
        flat = lax.broadcasted_iota(jnp.int32, (1, HW), 1)   # (1, HW) lane iota
        col = col_ref[...]                                   # (1, HW) int32

        # 1) Column-shifted, column-masked slabs: 6 XLU rolls + 6 selects total.
        slabs = []
        for dj in range(KSIZE):
            cs = dj - PAD
            if cs == 0:
                slabs.append(m)
            else:
                ok = jnp.logical_and(col + cs >= 0, col + cs < W)       # (1, HW)
                slabs.append(jnp.where(jnp.broadcast_to(ok, shape),
                                       pltpu.roll(m, shift=(-cs) % HW, axis=1),
                                       0.0))

        # 2) Per row offset: weighted dj-sum on the VPU (7 mul + 6 add), then a
        #    single row roll + row mask applied to the partial sum.  Since roll
        #    is linear this equals shifting every tap individually, but uses
        #    12 rolls / 12 selects instead of 48 / 48.
        acc = None
        for di in range(KSIZE):
            rs = di - PAD
            partial = None
            for dj in range(KSIZE):
                term = w_ref[di, dj] * slabs[dj]
                partial = term if partial is None else partial + term
            if rs == 0:
                tap = partial
            else:
                # row(p) + rs in [0, H)  <=>  flat in [(-rs)*W, (H - rs)*W)
                okr = jnp.logical_and(flat >= (-rs) * W, flat < (H - rs) * W)
                tap = jnp.where(jnp.broadcast_to(okr, shape),
                                pltpu.roll(partial, shift=(-rs * W) % HW, axis=1),
                                0.0)
            acc = tap if acc is None else acc + tap

        # sigmoid(a) = 1 / (1 + exp(-a)); exp + approx reciprocal run on the EUP.
        o_ref[...] = pl.reciprocal(1.0 + jnp.exp(-acc), approx=True).astype(o_ref.dtype)


def spatial_attention(x, conv_weight):
    """x: (B, C, H, W) float, conv_weight: (7, 7) f32 -> (B, 1, H, W) f32."""
    B, C, H, W = x.shape
    assert conv_weight.shape == (KSIZE, KSIZE)
    HW = H * W
    itemsize = jnp.dtype(x.dtype).itemsize

    # Lane-dense view (free metadata reshape on contiguous NCHW).
    x_flat = x.reshape(B, C, HW)

    # Batch tile: the (TB, HW) output block's sublane constraint requires TB to
    # be a multiple of 8 or equal to B.
    # TODO(synk): for v7x megacore with small/odd B (single batch tile), pad B to
    # >=2 tiles or add an H-tiled parallel axis with a 3-row halo for the conv.
    TB = B if (B <= 8 or B % 8 != 0) else 8

    vmem_cap = _vmem_capacity_bytes()
    budget = _input_block_budget(vmem_cap)
    TC = _pick_channel_tile(TB, C, HW, itemsize, budget)
    grid = (B // TB, C // TC)
    total_steps = grid[0] * grid[1]

    # Deeper input pipeline only pays off when there are enough grid steps to
    # keep streaming the next channel/batch blocks while the epilogue runs.
    n_buf = 3 if total_steps >= 3 else 2
    x_spec_kwargs = {}
    if n_buf > 2:
        x_spec_kwargs["pipeline_mode"] = pl.Buffered(n_buf)
    x_spec = pl.BlockSpec((TB, TC, HW), lambda b, c: (b, c, 0), **x_spec_kwargs)

    # Column index map (flat % W), precomputed so the kernel needs no int div/mod.
    col_idx = (jnp.arange(HW, dtype=jnp.int32) % W).reshape(1, HW)

    kernel = functools.partial(_spatial_attention_kernel, H=H, W=W)

    # VMEM budget: multi-buffered input + double-buffered output/col map +
    # resident max accumulator + headroom for epilogue temporaries (7 column
    # slabs, masks, partial/acc).  Cap at ~0.75x physical VMEM (v7x = 64 MiB).
    in_bytes = TB * TC * HW * itemsize
    out_bytes = TB * HW * 4
    col_bytes = HW * 4
    macc_bytes = TB * HW * itemsize
    epi_bytes = 10 * TB * HW * 4
    vmem_need = n_buf * in_bytes + 2 * (out_bytes + col_bytes) + macc_bytes + epi_bytes
    vmem_limit = int(min(max(vmem_need + vmem_need // 4, 16 * 1024 * 1024),
                         (vmem_cap * 3) // 4))

    out_flat = pl.pallas_call(
        kernel,
        out_shape=jax.ShapeDtypeStruct((B, HW), jnp.float32),
        grid_spec=pltpu.PrefetchScalarGridSpec(
            num_scalar_prefetch=0,
            grid=grid,
            in_specs=[
                x_spec,
                pl.BlockSpec(memory_space=pltpu.SMEM),        # (7, 7) weights
                pl.BlockSpec((1, HW), lambda b, c: (0, 0)),   # column index map
            ],
            out_specs=pl.BlockSpec((TB, HW), lambda b, c: (b, 0)),
            scratch_shapes=[pltpu.VMEM((TB, 1, HW), x.dtype)],
        ),
        compiler_params=pltpu.CompilerParams(
            dimension_semantics=("parallel", "arbitrary"),
            vmem_limit_bytes=vmem_limit,
        ),
    )(x_flat, conv_weight, col_idx)

    return out_flat.reshape(B, 1, H, W)


def _reference(x, conv_weight):
    """Plain-JAX reference matching the PyTorch forward."""
    max_out = jnp.max(x, axis=1, keepdims=True)                # (B,1,H,W)
    w = conv_weight.reshape(1, 1, KSIZE, KSIZE)                # OIHW
    y = lax.conv_general_dilated(
        max_out.astype(jnp.float32), w, window_strides=(1, 1),
        padding=[(PAD, PAD), (PAD, PAD)],
        dimension_numbers=("NCHW", "OIHW", "NCHW"))
    return jax.nn.sigmoid(y)


if __name__ == "__main__":
    key = jax.random.PRNGKey(0)
    kx, kw = jax.random.split(key)

    B, C, H, W = 2, 4, 16, 16
    x = jax.random.normal(kx, (B, C, H, W), dtype=jnp.float32)

    # Deterministic conv1 weight init (nn.Conv2d(1, 1, 7, bias=False) -> (1,1,7,7));
    # kaiming-uniform-like bound = 1/sqrt(fan_in) with fan_in = 1*7*7.
    bound = 1.0 / jnp.sqrt(jnp.float32(KSIZE * KSIZE))
    conv_weight = jax.random.uniform(
        kw, (KSIZE, KSIZE), dtype=jnp.float32, minval=-bound, maxval=bound)

    out = spatial_attention(x, conv_weight)
    out = jax.block_until_ready(out)

    ref = _reference(x, conv_weight)
    assert out.shape == (B, 1, H, W)
    # approx reciprocal on the EUP -> slightly looser tolerance than exact divide.
    assert jnp.allclose(out, ref, atol=5e-3, rtol=5e-3), "mismatch vs reference"

    print("KERNEL_OK")
</pallas_src>

<mosaic_0001>
module attributes {stable_mosaic.version = 11 : i64} {
  func.func @_spatial_attention_kernel(%arg0: i32, %arg1: i32, %arg2: memref<2x4x256xf32, #tpu.memory_space<vmem>>, %arg3: memref<7x7xf32, #tpu.memory_space<smem>>, %arg4: memref<1x256xi32, #tpu.memory_space<vmem>>, %arg5: memref<2x256xf32, #tpu.memory_space<vmem>>, %arg6: memref<2x1x256xf32, #tpu.memory_space<vmem>>) attributes {dimension_semantics = [#tpu.dimension_semantics<parallel>, #tpu.dimension_semantics<arbitrary>], iteration_bounds = array<i64: 1, 1>, scalar_prefetch = 0 : i64, scratch_operands = 1 : i64, tpu.core_type = #tpu.core_type<tc>, window_params = [{transform_indices = @transform_0, window_bounds = array<i64: 2, 4, 256>}, {transform_indices = @transform_1, window_bounds = array<i64: 7, 7>}, {pipeline_mode = #tpu.pipeline_mode<synchronous>, transform_indices = @transform_2, window_bounds = array<i64: 1, 256>}, {transform_indices = @transform_3, window_bounds = array<i64: 2, 256>}]} {
    %c0 = arith.constant 0 : index
    %c0_0 = arith.constant 0 : index
    %c0_1 = arith.constant 0 : index
    %0 = vector.load %arg2[%c0, %c0_0, %c0_1] : memref<2x4x256xf32, #tpu.memory_space<vmem>>, vector<2x4x256xf32>
    %cst = arith.constant dense<0xFF800000> : vector<2x256xf32>
    %1 = vector.multi_reduction <maximumf>, %0, %cst [1] : vector<2x4x256xf32> to vector<2x256xf32>
    %2 = vector.shape_cast %1 : vector<2x256xf32> to vector<2x1x256xf32>
    %c0_i32 = arith.constant 0 : i32
    %3 = arith.cmpi eq, %arg1, %c0_i32 : i32
    %4 = arith.extui %3 : i1 to i32
    %c0_i32_2 = arith.constant 0 : i32
    %5 = arith.cmpi ne, %4, %c0_i32_2 : i32
    scf.if %5 {
      %c0_7 = arith.constant 0 : index
      %c0_8 = arith.constant 0 : index
      %c0_9 = arith.constant 0 : index
      %12 = vector.load %arg6[%c0_7, %c0_8, %c0_9] : memref<2x1x256xf32, #tpu.memory_space<vmem>>, vector<2x1x256xf32>
      tpu.vector_store %arg6[%c0_7, %c0_8, %c0_9], %2 {strides = array<i32>} : memref<2x1x256xf32, #tpu.memory_space<vmem>>, vector<2x1x256xf32>,
    } else {
    }
    %c0_i32_3 = arith.constant 0 : i32
    %6 = arith.cmpi sgt, %arg1, %c0_i32_3 : i32
    %7 = arith.extui %6 : i1 to i32
    %c0_i32_4 = arith.constant 0 : i32
    %8 = arith.cmpi ne, %7, %c0_i32_4 : i32
    scf.if %8 {
      %c0_7 = arith.constant 0 : index
      %c0_8 = arith.constant 0 : index
      %c0_9 = arith.constant 0 : index
      %12 = vector.load %arg6[%c0_7, %c0_8, %c0_9] : memref<2x1x256xf32, #tpu.memory_space<vmem>>, vector<2x1x256xf32>
      %13 = arith.maximumf %12, %2 : vector<2x1x256xf32>
      %c0_10 = arith.constant 0 : index
      %c0_11 = arith.constant 0 : index
      %c0_12 = arith.constant 0 : index
      %14 = vector.load %arg6[%c0_10, %c0_11, %c0_12] : memref<2x1x256xf32, #tpu.memory_space<vmem>>, vector<2x1x256xf32>
      tpu.vector_store %arg6[%c0_10, %c0_11, %c0_12], %13 {strides = array<i32>} : memref<2x1x256xf32, #tpu.memory_space<vmem>>, vector<2x1x256xf32>,
    } else {
    }
    %c0_i32_5 = arith.constant 0 : i32
    %9 = arith.cmpi eq, %arg1, %c0_i32_5 : i32
    %10 = arith.extui %9 : i1 to i32
    %c0_i32_6 = arith.constant 0 : i32
    %11 = arith.cmpi ne, %10, %c0_i32_6 : i32
    scf.if %11 {
      %c0_7 = arith.constant 0 : index
      %c0_8 = arith.constant 0 : index
      %c0_9 = arith.constant 0 : index
      %12 = vector.load %arg6[%c0_7, %c0_8, %c0_9] : memref<2x1x256xf32, #tpu.memory_space<vmem>>, vector<2x1x256xf32>
      %13 = vector.shape_cast %12 : vector<2x1x256xf32> to vector<2x256xf32>
      %14 = tpu.iota {dimensions = array<i32: 1>} : vector<1x256xi32>
      %c0_10 = arith.constant 0 : index
      %c0_11 = arith.constant 0 : index
      %15 = vector.load %arg4[%c0_10, %c0_11] : memref<1x256xi32, #tpu.memory_space<vmem>>, vector<1x256xi32>
      %c-3_i32 = arith.constant -3 : i32
      %16 = vector.broadcast %c-3_i32 : i32 to vector<1x256xi32>
      %17 = arith.addi %15, %16 : vector<1x256xi32>
      %c0_i32_12 = arith.constant 0 : i32
      %18 = vector.broadcast %c0_i32_12 : i32 to vector<1x256xi32>
      %19 = arith.cmpi sge, %17, %18 : vector<1x256xi32>
      %c-3_i32_13 = arith.constant -3 : i32
      %20 = vector.broadcast %c-3_i32_13 : i32 to vector<1x256xi32>
      %21 = arith.addi %15, %20 : vector<1x256xi32>
      %c16_i32 = arith.constant 16 : i32
      %22 = vector.broadcast %c16_i32 : i32 to vector<1x256xi32>
      %23 = arith.cmpi slt, %21, %22 : vector<1x256xi32>
      %24 = arith.andi %19, %23 : vector<1x256xi1>
      %25 = vector.shape_cast %24 : vector<1x256xi1> to vector<1x256xi1>
      %26 = vector.broadcast %25 : vector<1x256xi1> to vector<2x256xi1>
      %c3_i32 = arith.constant 3 : i32
      %27 = tpu.dynamic_rotate %13 by %c3_i32 dim 1 : vector<2x256xf32>, i32 -> vector<2x256xf32>
      %cst_14 = arith.constant 0.000000e+00 : f32
      %28 = vector.broadcast %cst_14 : f32 to vector<2x256xf32>
      %29 = arith.select %26, %27, %28 : vector<2x256xi1>, vector<2x256xf32>
      %c-2_i32 = arith.constant -2 : i32
      %30 = vector.broadcast %c-2_i32 : i32 to vector<1x256xi32>
      %31 = arith.addi %15, %30 : vector<1x256xi32>
      %c0_i32_15 = arith.constant 0 : i32
      %32 = vector.broadcast %c0_i32_15 : i32 to vector<1x256xi32>
      %33 = arith.cmpi sge, %31, %32 : vector<1x256xi32>
      %c-2_i32_16 = arith.constant -2 : i32
      %34 = vector.broadcast %c-2_i32_16 : i32 to vector<1x256xi32>
      %35 = arith.addi %15, %34 : vector<1x256xi32>
      %c16_i32_17 = arith.constant 16 : i32
      %36 = vector.broadcast %c16_i32_17 : i32 to vector<1x256xi32>
      %37 = arith.cmpi slt, %35, %36 : vector<1x256xi32>
      %38 = arith.andi %33, %37 : vector<1x256xi1>
      %39 = vector.shape_cast %38 : vector<1x256xi1> to vector<1x256xi1>
      %40 = vector.broadcast %39 : vector<1x256xi1> to vector<2x256xi1>
      %c2_i32 = arith.constant 2 : i32
      %41 = tpu.dynamic_rotate %13 by %c2_i32 dim 1 : vector<2x256xf32>, i32 -> vector<2x256xf32>
      %cst_18 = arith.constant 0.000000e+00 : f32
      %42 = vector.broadcast %cst_18 : f32 to vector<2x256xf32>
      %43 = arith.select %40, %41, %42 : vector<2x256xi1>, vector<2x256xf32>
      %c-1_i32 = arith.constant -1 : i32
      %44 = vector.broadcast %c-1_i32 : i32 to vector<1x256xi32>
      %45 = arith.addi %15, %44 : vector<1x256xi32>
      %c0_i32_19 = arith.constant 0 : i32
      %46 = vector.broadcast %c0_i32_19 : i32 to vector<1x256xi32>
      %47 = arith.cmpi sge, %45, %46 : vector<1x256xi32>
      %c-1_i32_20 = arith.constant -1 : i32
      %48 = vector.broadcast %c-1_i32_20 : i32 to vector<1x256xi32>
      %49 = arith.addi %15, %48 : vector<1x256xi32>
      %c16_i32_21 = arith.constant 16 : i32
      %50 = vector.broadcast %c16_i32_21 : i32 to vector<1x256xi32>
      %51 = arith.cmpi slt, %49, %50 : vector<1x256xi32>
      %52 = arith.andi %47, %51 : vector<1x256xi1>
      %53 = vector.shape_cast %52 : vector<1x256xi1> to vector<1x256xi1>
      %54 = vector.broadcast %53 : vector<1x256xi1> to vector<2x256xi1>
      %c1_i32 = arith.constant 1 : i32
      %55 = tpu.dynamic_rotate %13 by %c1_i32 dim 1 : vector<2x256xf32>, i32 -> vector<2x256xf32>
      %cst_22 = arith.constant 0.000000e+00 : f32
      %56 = vector.broadcast %cst_22 : f32 to vector<2x256xf32>
      %57 = arith.select %54, %55, %56 : vector<2x256xi1>, vector<2x256xf32>
      %c1_i32_23 = arith.constant 1 : i32
      %58 = vector.broadcast %c1_i32_23 : i32 to vector<1x256xi32>
      %59 = arith.addi %15, %58 : vector<1x256xi32>
      %c0_i32_24 = arith.constant 0 : i32
      %60 = vector.broadcast %c0_i32_24 : i32 to vector<1x256xi32>
      %61 = arith.cmpi sge, %59, %60 : vector<1x256xi32>
      %c1_i32_25 = arith.constant 1 : i32
      %62 = vector.broadcast %c1_i32_25 : i32 to vector<1x256xi32>
      %63 = arith.addi %15, %62 : vector<1x256xi32>
      %c16_i32_26 = arith.constant 16 : i32
      %64 = vector.broadcast %c16_i32_26 : i32 to vector<1x256xi32>
      %65 = arith.cmpi slt, %63, %64 : vector<1x256xi32>
      %66 = arith.andi %61, %65 : vector<1x256xi1>
      %67 = vector.shape_cast %66 : vector<1x256xi1> to vector<1x256xi1>
      %68 = vector.broadcast %67 : vector<1x256xi1> to vector<2x256xi1>
      %c255_i32 = arith.constant 255 : i32
      %69 = tpu.dynamic_rotate %13 by %c255_i32 dim 1 : vector<2x256xf32>, i32 -> vector<2x256xf32>
      %cst_27 = arith.constant 0.000000e+00 : f32
      %70 = vector.broadcast %cst_27 : f32 to vector<2x256xf32>
      %71 = arith.select %68, %69, %70 : vector<2x256xi1>, vector<2x256xf32>
      %c2_i32_28 = arith.constant 2 : i32
      %72 = vector.broadcast %c2_i32_28 : i32 to vector<1x256xi32>
      %73 = arith.addi %15, %72 : vector<1x256xi32>
      %c0_i32_29 = arith.constant 0 : i32
      %74 = vector.broadcast %c0_i32_29 : i32 to vector<1x256xi32>
      %75 = arith.cmpi sge, %73, %74 : vector<1x256xi32>
      %c2_i32_30 = arith.constant 2 : i32
      %76 = vector.broadcast %c2_i32_30 : i32 to vector<1x256xi32>
      %77 = arith.addi %15, %76 : vector<1x256xi32>
      %c16_i32_31 = arith.constant 16 : i32
      %78 = vector.broadcast %c16_i32_31 : i32 to vector<1x256xi32>
      %79 = arith.cmpi slt, %77, %78 : vector<1x256xi32>
      %80 = arith.andi %75, %79 : vector<1x256xi1>
      %81 = vector.shape_cast %80 : vector<1x256xi1> to vector<1x256xi1>
      %82 = vector.broadcast %81 : vector<1x256xi1> to vector<2x256xi1>
      %c254_i32 = arith.constant 254 : i32
      %83 = tpu.dynamic_rotate %13 by %c254_i32 dim 1 : vector<2x256xf32>, i32 -> vector<2x256xf32>
      %cst_32 = arith.constant 0.000000e+00 : f32
      %84 = vector.broadcast %cst_32 : f32 to vector<2x256xf32>
      %85 = arith.select %82, %83, %84 : vector<2x256xi1>, vector<2x256xf32>
      %c3_i32_33 = arith.constant 3 : i32
      %86 = vector.broadcast %c3_i32_33 : i32 to vector<1x256xi32>
      %87 = arith.addi %15, %86 : vector<1x256xi32>
      %c0_i32_34 = arith.constant 0 : i32
      %88 = vector.broadcast %c0_i32_34 : i32 to vector<1x256xi32>
      %89 = arith.cmpi sge, %87, %88 : vector<1x256xi32>
      %c3_i32_35 = arith.constant 3 : i32
      %90 = vector.broadcast %c3_i32_35 : i32 to vector<1x256xi32>
      %91 = arith.addi %15, %90 : vector<1x256xi32>
      %c16_i32_36 = arith.constant 16 : i32
      %92 = vector.broadcast %c16_i32_36 : i32 to vector<1x256xi32>
      %93 = arith.cmpi slt, %91, %92 : vector<1x256xi32>
      %94 = arith.andi %89, %93 : vector<1x256xi1>
      %95 = vector.shape_cast %94 : vector<1x256xi1> to vector<1x256xi1>
      %96 = vector.broadcast %95 : vector<1x256xi1> to vector<2x256xi1>
      %c253_i32 = arith.constant 253 : i32
      %97 = tpu.dynamic_rotate %13 by %c253_i32 dim 1 : vector<2x256xf32>, i32 -> vector<2x256xf32>
      %cst_37 = arith.constant 0.000000e+00 : f32
      %98 = vector.broadcast %cst_37 : f32 to vector<2x256xf32>
      %99 = arith.select %96, %97, %98 : vector<2x256xi1>, vector<2x256xf32>
      %c0_38 = arith.constant 0 : index
      %c0_39 = arith.constant 0 : index
      %100 = memref.load %arg3[%c0_38, %c0_39] : memref<7x7xf32, #tpu.memory_space<smem>>
      %101 = vector.broadcast %100 : f32 to vector<2x256xf32>
      %102 = arith.mulf %101, %29 : vector<2x256xf32>
      %c0_40 = arith.constant 0 : index
      %c1 = arith.constant 1 : index
      %103 = memref.load %arg3[%c0_40, %c1] : memref<7x7xf32, #tpu.memory_space<smem>>
      %104 = vector.broadcast %103 : f32 to vector<2x256xf32>
      %105 = arith.mulf %104, %43 : vector<2x256xf32>
      %106 = arith.addf %102, %105 : vector<2x256xf32>
      %c0_41 = arith.constant 0 : index
      %c2 = arith.constant 2 : index
      %107 = memref.load %arg3[%c0_41, %c2] : memref<7x7xf32, #tpu.memory_space<smem>>
      %108 = vector.broadcast %107 : f32 to vector<2x256xf32>
      %109 = arith.mulf %108, %57 : vector<2x256xf32>
      %110 = arith.addf %106, %109 : vector<2x256xf32>
      %c0_42 = arith.constant 0 : index
      %c3 = arith.constant 3 : index
      %111 = memref.load %arg3[%c0_42, %c3] : memref<7x7xf32, #tpu.memory_space<smem>>
      %112 = vector.broadcast %111 : f32 to vector<2x256xf32>
      %113 = arith.mulf %112, %13 : vector<2x256xf32>
      %114 = arith.addf %110, %113 : vector<2x256xf32>
      %c0_43 = arith.constant 0 : index
      %c4 = arith.constant 4 : index
      %115 = memref.load %arg3[%c0_43, %c4] : memref<7x7xf32, #tpu.memory_space<smem>>
      %116 = vector.broadcast %115 : f32 to vector<2x256xf32>
      %117 = arith.mulf %116, %71 : vector<2x256xf32>
      %118 = arith.addf %114, %117 : vector<2x256xf32>
      %c0_44 = arith.constant 0 : index
      %c5 = arith.constant 5 : index
      %119 = memref.load %arg3[%c0_44, %c5] : memref<7x7xf32, #tpu.memory_space<smem>>
      %120 = vector.broadcast %119 : f32 to vector<2x256xf32>
      %121 = arith.mulf %120, %85 : vector<2x256xf32>
      %122 = arith.addf %118, %121 : vector<2x256xf32>
      %c0_45 = arith.constant 0 : index
      %c6 = arith.constant 6 : index
      %123 = memref.load %arg3[%c0_45, %c6] : memref<7x7xf32, #tpu.memory_space<smem>>
      %124 = vector.broadcast %123 : f32 to vector<2x256xf32>
      %125 = arith.mulf %124, %99 : vector<2x256xf32>
      %126 = arith.addf %122, %125 : vector<2x256xf32>
      %c48_i32 = arith.constant 48 : i32
      %127 = vector.broadcast %c48_i32 : i32 to vector<1x256xi32>
      %128 = arith.cmpi sge, %14, %127 : vector<1x256xi32>
      %c304_i32 = arith.constant 304 : i32
      %129 = vector.broadcast %c304_i32 : i32 to vector<1x256xi32>
      %130 = arith.cmpi slt, %14, %129 : vector<1x256xi32>
      %131 = arith.andi %128, %130 : vector<1x256xi1>
      %132 = vector.shape_cast %131 : vector<1x256xi1> to vector<1x256xi1>
      %133 = vector.broadcast %132 : vector<1x256xi1> to vector<2x256xi1>
      %c48_i32_46 = arith.constant 48 : i32
      %134 = tpu.dynamic_rotate %126 by %c48_i32_46 dim 1 : vector<2x256xf32>, i32 -> vector<2x256xf32>
      %cst_47 = arith.constant 0.000000e+00 : f32
      %135 = vector.broadcast %cst_47 : f32 to vector<2x256xf32>
      %136 = arith.select %133, %134, %135 : vector<2x256xi1>, vector<2x256xf32>
      %c1_48 = arith.constant 1 : index
      %c0_49 = arith.constant 0 : index
      %137 = memref.load %arg3[%c1_48, %c0_49] : memref<7x7xf32, #tpu.memory_space<smem>>
      %138 = vector.broadcast %137 : f32 to vector<2x256xf32>
      %139 = arith.mulf %138, %29 : vector<2x256xf32>
      %c1_50 = arith.constant 1 : index
      %c1_51 = arith.constant 1 : index
      %140 = memref.load %arg3[%c1_50, %c1_51] : memref<7x7xf32, #tpu.memory_space<smem>>
      %141 = vector.broadcast %140 : f32 to vector<2x256xf32>
      %142 = arith.mulf %141, %43 : vector<2x256xf32>
      %143 = arith.addf %139, %142 : vector<2x256xf32>
      %c1_52 = arith.constant 1 : index
      %c2_53 = arith.constant 2 : index
      %144 = memref.load %arg3[%c1_52, %c2_53] : memref<7x7xf32, #tpu.memory_space<smem>>
      %145 = vector.broadcast %144 : f32 to vector<2x256xf32>
      %146 = arith.mulf %145, %57 : vector<2x256xf32>
      %147 = arith.addf %143, %146 : vector<2x256xf32>
      %c1_54 = arith.constant 1 : index
      %c3_55 = arith.constant 3 : index
      %148 = memref.load %arg3[%c1_54, %c3_55] : memref<7x7xf32, #tpu.memory_space<smem>>
      %149 = vector.broadcast %148 : f32 to vector<2x256xf32>
      %150 = arith.mulf %149, %13 : vector<2x256xf32>
      %151 = arith.addf %147, %150 : vector<2x256xf32>
      %c1_56 = arith.constant 1 : index
      %c4_57 = arith.constant 4 : index
      %152 = memref.load %arg3[%c1_56, %c4_57] : memref<7x7xf32, #tpu.memory_space<smem>>
      %153 = vector.broadcast %152 : f32 to vector<2x256xf32>
      %154 = arith.mulf %153, %71 : vector<2x256xf32>
      %155 = arith.addf %151, %154 : vector<2x256xf32>
      %c1_58 = arith.constant 1 : index
      %c5_59 = arith.constant 5 : index
      %156 = memref.load %arg3[%c1_58, %c5_59] : memref<7x7xf32, #tpu.memory_space<smem>>
      %157 = vector.broadcast %156 : f32 to vector<2x256xf32>
      %158 = arith.mulf %157, %85 : vector<2x256xf32>
      %159 = arith.addf %155, %158 : vector<2x256xf32>
      %c1_60 = arith.constant 1 : index
      %c6_61 = arith.constant 6 : index
      %160 = memref.load %arg3[%c1_60, %c6_61] : memref<7x7xf32, #tpu.memory_space<smem>>
      %161 = vector.broadcast %160 : f32 to vector<2x256xf32>
      %162 = arith.mulf %161, %99 : vector<2x256xf32>
      %163 = arith.addf %159, %162 : vector<2x256xf32>
      %c32_i32 = arith.constant 32 : i32
      %164 = vector.broadcast %c32_i32 : i32 to vector<1x256xi32>
      %165 = arith.cmpi sge, %14, %164 : vector<1x256xi32>
      %c288_i32 = arith.constant 288 : i32
      %166 = vector.broadcast %c288_i32 : i32 to vector<1x256xi32>
      %167 = arith.cmpi slt, %14, %166 : vector<1x256xi32>
      %168 = arith.andi %165, %167 : vector<1x256xi1>
      %169 = vector.shape_cast %168 : vector<1x256xi1> to vector<1x256xi1>
      %170 = vector.broadcast %169 : vector<1x256xi1> to vector<2x256xi1>
      %c32_i32_62 = arith.constant 32 : i32
      %171 = tpu.dynamic_rotate %163 by %c32_i32_62 dim 1 : vector<2x256xf32>, i32 -> vector<2x256xf32>
      %cst_63 = arith.constant 0.000000e+00 : f32
      %172 = vector.broadcast %cst_63 : f32 to vector<2x256xf32>
      %173 = arith.select %170, %171, %172 : vector<2x256xi1>, vector<2x256xf32>
      %174 = arith.addf %136, %173 : vector<2x256xf32>
      %c2_64 = arith.constant 2 : index
      %c0_65 = arith.constant 0 : index
      %175 = memref.load %arg3[%c2_64, %c0_65] : memref<7x7xf32, #tpu.memory_space<smem>>
      %176 = vector.broadcast %175 : f32 to vector<2x256xf32>
      %177 = arith.mulf %176, %29 : vector<2x256xf32>
      %c2_66 = arith.constant 2 : index
      %c1_67 = arith.constant 1 : index
      %178 = memref.load %arg3[%c2_66, %c1_67] : memref<7x7xf32, #tpu.memory_space<smem>>
      %179 = vector.broadcast %178 : f32 to vector<2x256xf32>
      %180 = arith.mulf %179, %43 : vector<2x256xf32>
      %181 = arith.addf %177, %180 : vector<2x256xf32>
      %c2_68 = arith.constant 2 : index
      %c2_69 = arith.constant 2 : index
      %182 = memref.load %arg3[%c2_68, %c2_69] : memref<7x7xf32, #tpu.memory_space<smem>>
      %183 = vector.broadcast %182 : f32 to vector<2x256xf32>
      %184 = arith.mulf %183, %57 : vector<2x256xf32>
      %185 = arith.addf %181, %184 : vector<2x256xf32>
      %c2_70 = arith.constant 2 : index
      %c3_71 = arith.constant 3 : index
      %186 = memref.load %arg3[%c2_70, %c3_71] : memref<7x7xf32, #tpu.memory_space<smem>>
      %187 = vector.broadcast %186 : f32 to vector<2x256xf32>
      %188 = arith.mulf %187, %13 : vector<2x256xf32>
      %189 = arith.addf %185, %188 : vector<2x256xf32>
      %c2_72 = arith.constant 2 : index
      %c4_73 = arith.constant 4 : index
      %190 = memref.load %arg3[%c2_72, %c4_73] : memref<7x7xf32, #tpu.memory_space<smem>>
      %191 = vector.broadcast %190 : f32 to vector<2x256xf32>
      %192 = arith.mulf %191, %71 : vector<2x256xf32>
      %193 = arith.addf %189, %192 : vector<2x256xf32>
      %c2_74 = arith.constant 2 : index
      %c5_75 = arith.constant 5 : index
      %194 = memref.load %arg3[%c2_74, %c5_75] : memref<7x7xf32, #tpu.memory_space<smem>>
      %195 = vector.broadcast %194 : f32 to vector<2x256xf32>
      %196 = arith.mulf %195, %85 : vector<2x256xf32>
      %197 = arith.addf %193, %196 : vector<2x256xf32>
      %c2_76 = arith.constant 2 : index
      %c6_77 = arith.constant 6 : index
      %198 = memref.load %arg3[%c2_76, %c6_77] : memref<7x7xf32, #tpu.memory_space<smem>>
      %199 = vector.broadcast %198 : f32 to vector<2x256xf32>
      %200 = arith.mulf %199, %99 : vector<2x256xf32>
      %201 = arith.addf %197, %200 : vector<2x256xf32>
      %c16_i32_78 = arith.constant 16 : i32
      %202 = vector.broadcast %c16_i32_78 : i32 to vector<1x256xi32>
      %203 = arith.cmpi sge, %14, %202 : vector<1x256xi32>
      %c272_i32 = arith.constant 272 : i32
      %204 = vector.broadcast %c272_i32 : i32 to vector<1x256xi32>
      %205 = arith.cmpi slt, %14, %204 : vector<1x256xi32>
      %206 = arith.andi %203, %205 : vector<1x256xi1>
      %207 = vector.shape_cast %206 : vector<1x256xi1> to vector<1x256xi1>
      %208 = vector.broadcast %207 : vector<1x256xi1> to vector<2x256xi1>
      %c16_i32_79 = arith.constant 16 : i32
      %209 = tpu.dynamic_rotate %201 by %c16_i32_79 dim 1 : vector<2x256xf32>, i32 -> vector<2x256xf32>
      %cst_80 = arith.constant 0.000000e+00 : f32
      %210 = vector.broadcast %cst_80 : f32 to vector<2x256xf32>
      %211 = arith.select %208, %209, %210 : vector<2x256xi1>, vector<2x256xf32>
      %212 = arith.addf %174, %211 : vector<2x256xf32>
      %c3_81 = arith.constant 3 : index
      %c0_82 = arith.constant 0 : index
      %213 = memref.load %arg3[%c3_81, %c0_82] : memref<7x7xf32, #tpu.memory_space<smem>>
      %214 = vector.broadcast %213 : f32 to vector<2x256xf32>
      %215 = arith.mulf %214, %29 : vector<2x256xf32>
      %c3_83 = arith.constant 3 : index
      %c1_84 = arith.constant 1 : index
      %216 = memref.load %arg3[%c3_83, %c1_84] : memref<7x7xf32, #tpu.memory_space<smem>>
      %217 = vector.broadcast %216 : f32 to vector<2x256xf32>
      %218 = arith.mulf %217, %43 : vector<2x256xf32>
      %219 = arith.addf %215, %218 : vector<2x256xf32>
      %c3_85 = arith.constant 3 : index
      %c2_86 = arith.constant 2 : index
      %220 = memref.load %arg3[%c3_85, %c2_86] : memref<7x7xf32, #tpu.memory_space<smem>>
      %221 = vector.broadcast %220 : f32 to vector<2x256xf32>
      %222 = arith.mulf %221, %57 : vector<2x256xf32>
      %223 = arith.addf %219, %222 : vector<2x256xf32>
      %c3_87 = arith.constant 3 : index
      %c3_88 = arith.constant 3 : index
      %224 = memref.load %arg3[%c3_87, %c3_88] : memref<7x7xf32, #tpu.memory_space<smem>>
      %225 = vector.broadcast %224 : f32 to vector<2x256xf32>
      %226 = arith.mulf %225, %13 : vector<2x256xf32>
      %227 = arith.addf %223, %226 : vector<2x256xf32>
      %c3_89 = arith.constant 3 : index
      %c4_90 = arith.constant 4 : index
      %228 = memref.load %arg3[%c3_89, %c4_90] : memref<7x7xf32, #tpu.memory_space<smem>>
      %229 = vector.broadcast %228 : f32 to vector<2x256xf32>
      %230 = arith.mulf %229, %71 : vector<2x256xf32>
      %231 = arith.addf %227, %230 : vector<2x256xf32>
      %c3_91 = arith.constant 3 : index
      %c5_92 = arith.constant 5 : index
      %232 = memref.load %arg3[%c3_91, %c5_92] : memref<7x7xf32, #tpu.memory_space<smem>>
      %233 = vector.broadcast %232 : f32 to vector<2x256xf32>
      %234 = arith.mulf %233, %85 : vector<2x256xf32>
      %235 = arith.addf %231, %234 : vector<2x256xf32>
      %c3_93 = arith.constant 3 : index
      %c6_94 = arith.constant 6 : index
      %236 = memref.load %arg3[%c3_93, %c6_94] : memref<7x7xf32, #tpu.memory_space<smem>>
      %237 = vector.broadcast %236 : f32 to vector<2x256xf32>
      %238 = arith.mulf %237, %99 : vector<2x256xf32>
      %239 = arith.addf %235, %238 : vector<2x256xf32>
      %240 = arith.addf %212, %239 : vector<2x256xf32>
      %c4_95 = arith.constant 4 : index
      %c0_96 = arith.constant 0 : index
      %241 = memref.load %arg3[%c4_95, %c0_96] : memref<7x7xf32, #tpu.memory_space<smem>>
      %242 = vector.broadcast %241 : f32 to vector<2x256xf32>
      %243 = arith.mulf %242, %29 : vector<2x256xf32>
      %c4_97 = arith.constant 4 : index
      %c1_98 = arith.constant 1 : index
      %244 = memref.load %arg3[%c4_97, %c1_98] : memref<7x7xf32, #tpu.memory_space<smem>>
      %245 = vector.broadcast %244 : f32 to vector<2x256xf32>
      %246 = arith.mulf %245, %43 : vector<2x256xf32>
      %247 = arith.addf %243, %246 : vector<2x256xf32>
      %c4_99 = arith.constant 4 : index
      %c2_100 = arith.constant 2 : index
      %248 = memref.load %arg3[%c4_99, %c2_100] : memref<7x7xf32, #tpu.memory_space<smem>>
      %249 = vector.broadcast %248 : f32 to vector<2x256xf32>
      %250 = arith.mulf %249, %57 : vector<2x256xf32>
      %251 = arith.addf %247, %250 : vector<2x256xf32>
      %c4_101 = arith.constant 4 : index
      %c3_102 = arith.constant 3 : index
      %252 = memref.load %arg3[%c4_101, %c3_102] : memref<7x7xf32, #tpu.memory_space<smem>>
      %253 = vector.broadcast %252 : f32 to vector<2x256xf32>
      %254 = arith.mulf %253, %13 : vector<2x256xf32>
      %255 = arith.addf %251, %254 : vector<2x256xf32>
      %c4_103 = arith.constant 4 : index
      %c4_104 = arith.constant 4 : index
      %256 = memref.load %arg3[%c4_103, %c4_104] : memref<7x7xf32, #tpu.memory_space<smem>>
      %257 = vector.broadcast %256 : f32 to vector<2x256xf32>
      %258 = arith.mulf %257, %71 : vector<2x256xf32>
      %259 = arith.addf %255, %258 : vector<2x256xf32>
      %c4_105 = arith.constant 4 : index
      %c5_106 = arith.constant 5 : index
      %260 = memref.load %arg3[%c4_105, %c5_106] : memref<7x7xf32, #tpu.memory_space<smem>>
      %261 = vector.broadcast %260 : f32 to vector<2x256xf32>
      %262 = arith.mulf %261, %85 : vector<2x256xf32>
      %263 = arith.addf %259, %262 : vector<2x256xf32>
      %c4_107 = arith.constant 4 : index
      %c6_108 = arith.constant 6 : index
      %264 = memref.load %arg3[%c4_107, %c6_108] : memref<7x7xf32, #tpu.memory_space<smem>>
      %265 = vector.broadcast %264 : f32 to vector<2x256xf32>
      %266 = arith.mulf %265, %99 : vector<2x256xf32>
      %267 = arith.addf %263, %266 : vector<2x256xf32>
      %c-16_i32 = arith.constant -16 : i32
      %268 = vector.broadcast %c-16_i32 : i32 to vector<1x256xi32>
      %269 = arith.cmpi sge, %14, %268 : vector<1x256xi32>
      %c240_i32 = arith.constant 240 : i32
      %270 = vector.broadcast %c240_i32 : i32 to vector<1x256xi32>
      %271 = arith.cmpi slt, %14, %270 : vector<1x256xi32>
      %272 = arith.andi %269, %271 : vector<1x256xi1>
      %273 = vector.shape_cast %272 : vector<1x256xi1> to vector<1x256xi1>
      %274 = vector.broadcast %273 : vector<1x256xi1> to vector<2x256xi1>
      %c240_i32_109 = arith.constant 240 : i32
      %275 = tpu.dynamic_rotate %267 by %c240_i32_109 dim 1 : vector<2x256xf32>, i32 -> vector<2x256xf32>
      %cst_110 = arith.constant 0.000000e+00 : f32
      %276 = vector.broadcast %cst_110 : f32 to vector<2x256xf32>
      %277 = arith.select %274, %275, %276 : vector<2x256xi1>, vector<2x256xf32>
      %278 = arith.addf %240, %277 : vector<2x256xf32>
      %c5_111 = arith.constant 5 : index
      %c0_112 = arith.constant 0 : index
      %279 = memref.load %arg3[%c5_111, %c0_112] : memref<7x7xf32, #tpu.memory_space<smem>>
      %280 = vector.broadcast %279 : f32 to vector<2x256xf32>
      %281 = arith.mulf %280, %29 : vector<2x256xf32>
      %c5_113 = arith.constant 5 : index
      %c1_114 = arith.constant 1 : index
      %282 = memref.load %arg3[%c5_113, %c1_114] : memref<7x7xf32, #tpu.memory_space<smem>>
      %283 = vector.broadcast %282 : f32 to vector<2x256xf32>
      %284 = arith.mulf %283, %43 : vector<2x256xf32>
      %285 = arith.addf %281, %284 : vector<2x256xf32>
      %c5_115 = arith.constant 5 : index
      %c2_116 = arith.constant 2 : index
      %286 = memref.load %arg3[%c5_115, %c2_116] : memref<7x7xf32, #tpu.memory_space<smem>>
      %287 = vector.broadcast %286 : f32 to vector<2x256xf32>
      %288 = arith.mulf %287, %57 : vector<2x256xf32>
      %289 = arith.addf %285, %288 : vector<2x256xf32>
      %c5_117 = arith.constant 5 : index
      %c3_118 = arith.constant 3 : index
      %290 = memref.load %arg3[%c5_117, %c3_118] : memref<7x7xf32, #tpu.memory_space<smem>>
      %291 = vector.broadcast %290 : f32 to vector<2x256xf32>
      %292 = arith.mulf %291, %13 : vector<2x256xf32>
      %293 = arith.addf %289, %292 : vector<2x256xf32>
      %c5_119 = arith.constant 5 : index
      %c4_120 = arith.constant 4 : index
      %294 = memref.load %arg3[%c5_119, %c4_120] : memref<7x7xf32, #tpu.memory_space<smem>>
      %295 = vector.broadcast %294 : f32 to vector<2x256xf32>
      %296 = arith.mulf %295, %71 : vector<2x256xf32>
      %297 = arith.addf %293, %296 : vector<2x256xf32>
      %c5_121 = arith.constant 5 : index
      %c5_122 = arith.constant 5 : index
      %298 = memref.load %arg3[%c5_121, %c5_122] : memref<7x7xf32, #tpu.memory_space<smem>>
      %299 = vector.broadcast %298 : f32 to vector<2x256xf32>
      %300 = arith.mulf %299, %85 : vector<2x256xf32>
      %301 = arith.addf %297, %300 : vector<2x256xf32>
      %c5_123 = arith.constant 5 : index
      %c6_124 = arith.constant 6 : index
      %302 = memref.load %arg3[%c5_123, %c6_124] : memref<7x7xf32, #tpu.memory_space<smem>>
      %303 = vector.broadcast %302 : f32 to vector<2x256xf32>
      %304 = arith.mulf %303, %99 : vector<2x256xf32>
      %305 = arith.addf %301, %304 : vector<2x256xf32>
      %c-32_i32 = arith.constant -32 : i32
      %306 = vector.broadcast %c-32_i32 : i32 to vector<1x256xi32>
      %307 = arith.cmpi sge, %14, %306 : vector<1x256xi32>
      %c224_i32 = arith.constant 224 : i32
      %308 = vector.broadcast %c224_i32 : i32 to vector<1x256xi32>
      %309 = arith.cmpi slt, %14, %308 : vector<1x256xi32>
      %310 = arith.andi %307, %309 : vector<1x256xi1>
      %311 = vector.shape_cast %310 : vector<1x256xi1> to vector<1x256xi1>
      %312 = vector.broadcast %311 : vector<1x256xi1> to vector<2x256xi1>
      %c224_i32_125 = arith.constant 224 : i32
      %313 = tpu.dynamic_rotate %305 by %c224_i32_125 dim 1 : vector<2x256xf32>, i32 -> vector<2x256xf32>
      %cst_126 = arith.constant 0.000000e+00 : f32
      %314 = vector.broadcast %cst_126 : f32 to vector<2x256xf32>
      %315 = arith.select %312, %313, %314 : vector<2x256xi1>, vector<2x256xf32>
      %316 = arith.addf %278, %315 : vector<2x256xf32>
      %c6_127 = arith.constant 6 : index
      %c0_128 = arith.constant 0 : index
      %317 = memref.load %arg3[%c6_127, %c0_128] : memref<7x7xf32, #tpu.memory_space<smem>>
      %318 = vector.broadcast %317 : f32 to vector<2x256xf32>
      %319 = arith.mulf %318, %29 : vector<2x256xf32>
      %c6_129 = arith.constant 6 : index
      %c1_130 = arith.constant 1 : index
      %320 = memref.load %arg3[%c6_129, %c1_130] : memref<7x7xf32, #tpu.memory_space<smem>>
      %321 = vector.broadcast %320 : f32 to vector<2x256xf32>
      %322 = arith.mulf %321, %43 : vector<2x256xf32>
      %323 = arith.addf %319, %322 : vector<2x256xf32>
      %c6_131 = arith.constant 6 : index
      %c2_132 = arith.constant 2 : index
      %324 = memref.load %arg3[%c6_131, %c2_132] : memref<7x7xf32, #tpu.memory_space<smem>>
      %325 = vector.broadcast %324 : f32 to vector<2x256xf32>
      %326 = arith.mulf %325, %57 : vector<2x256xf32>
      %327 = arith.addf %323, %326 : vector<2x256xf32>
      %c6_133 = arith.constant 6 : index
      %c3_134 = arith.constant 3 : index
      %328 = memref.load %arg3[%c6_133, %c3_134] : memref<7x7xf32, #tpu.memory_space<smem>>
      %329 = vector.broadcast %328 : f32 to vector<2x256xf32>
      %330 = arith.mulf %329, %13 : vector<2x256xf32>
      %331 = arith.addf %327, %330 : vector<2x256xf32>
      %c6_135 = arith.constant 6 : index
      %c4_136 = arith.constant 4 : index
      %332 = memref.load %arg3[%c6_135, %c4_136] : memref<7x7xf32, #tpu.memory_space<smem>>
      %333 = vector.broadcast %332 : f32 to vector<2x256xf32>
      %334 = arith.mulf %333, %71 : vector<2x256xf32>
      %335 = arith.addf %331, %334 : vector<2x256xf32>
      %c6_137 = arith.constant 6 : index
      %c5_138 = arith.constant 5 : index
      %336 = memref.load %arg3[%c6_137, %c5_138] : memref<7x7xf32, #tpu.memory_space<smem>>
      %337 = vector.broadcast %336 : f32 to vector<2x256xf32>
      %338 = arith.mulf %337, %85 : vector<2x256xf32>
      %339 = arith.addf %335, %338 : vector<2x256xf32>
      %c6_139 = arith.constant 6 : index
      %c6_140 = arith.constant 6 : index
      %340 = memref.load %arg3[%c6_139, %c6_140] : memref<7x7xf32, #tpu.memory_space<smem>>
      %341 = vector.broadcast %340 : f32 to vector<2x256xf32>
      %342 = arith.mulf %341, %99 : vector<2x256xf32>
      %343 = arith.addf %339, %342 : vector<2x256xf32>
      %c-48_i32 = arith.constant -48 : i32
      %344 = vector.broadcast %c-48_i32 : i32 to vector<1x256xi32>
      %345 = arith.cmpi sge, %14, %344 : vector<1x256xi32>
      %c208_i32 = arith.constant 208 : i32
      %346 = vector.broadcast %c208_i32 : i32 to vector<1x256xi32>
      %347 = arith.cmpi slt, %14, %346 : vector<1x256xi32>
      %348 = arith.andi %345, %347 : vector<1x256xi1>
      %349 = vector.shape_cast %348 : vector<1x256xi1> to vector<1x256xi1>
      %350 = vector.broadcast %349 : vector<1x256xi1> to vector<2x256xi1>
      %c208_i32_141 = arith.constant 208 : i32
      %351 = tpu.dynamic_rotate %343 by %c208_i32_141 dim 1 : vector<2x256xf32>, i32 -> vector<2x256xf32>
      %cst_142 = arith.constant 0.000000e+00 : f32
      %352 = vector.broadcast %cst_142 : f32 to vector<2x256xf32>
      %353 = arith.select %350, %351, %352 : vector<2x256xi1>, vector<2x256xf32>
      %354 = arith.addf %316, %353 : vector<2x256xf32>
      %cst_143 = arith.constant 0.000000e+00 : f32
      %355 = vector.broadcast %cst_143 : f32 to vector<2x256xf32>
      %356 = arith.subf %355, %354 : vector<2x256xf32>
      %357 = math.exp %356 : vector<2x256xf32>
      %cst_144 = arith.constant 1.000000e+00 : f32
      %358 = vector.broadcast %cst_144 : f32 to vector<2x256xf32>
      %359 = arith.addf %358, %357 : vector<2x256xf32>
      %360 = tpu.reciprocal %359 {approx = true} : vector<2x256xf32> -> vector<2x256xf32>
      %c0_145 = arith.constant 0 : index
      %c0_146 = arith.constant 0 : index
      %361 = vector.load %arg5[%c0_145, %c0_146] : memref<2x256xf32, #tpu.memory_space<vmem>>, vector<2x256xf32>
      tpu.vector_store %arg5[%c0_145, %c0_146], %360 {strides = array<i32>} : memref<2x256xf32, #tpu.memory_space<vmem>>, vector<2x256xf32>,
    } else {
    }
    return
  }
  func.func @transform_0(%arg0: i32, %arg1: i32) -> (i32, i32, i32) {
    %c0_i32 = arith.constant 0 : i32
    %c0_i32_0 = arith.constant 0 : i32
    return %arg0, %arg1, %c0_i32 : i32, i32, i32
  }
  func.func @transform_1(%arg0: i32, %arg1: i32) -> (i32, i32) {
    %c0_i32 = arith.constant 0 : i32
    %c0_i32_0 = arith.constant 0 : i32
    %c0_i32_1 = arith.constant 0 : i32
    return %c0_i32, %c0_i32_0 : i32, i32
  }
  func.func @transform_2(%arg0: i32, %arg1: i32) -> (i32, i32) {
    %c0_i32 = arith.constant 0 : i32
    %c0_i32_0 = arith.constant 0 : i32
    %c0_i32_1 = arith.constant 0 : i32
    return %c0_i32, %c0_i32_0 : i32, i32
  }
  func.func @transform_3(%arg0: i32, %arg1: i32) -> (i32, i32) {
    %c0_i32 = arith.constant 0 : i32
    %c0_i32_0 = arith.constant 0 : i32
    return %arg0, %c0_i32 : i32, i32
  }
}

</mosaic_0001>

<llo_original>
// kernel: tpu_custom_call.1
$region0: #{tpu_custom_call.1}
  #allocation0 [shape = 'u32[]', space=smem, size = 0x4, offset = 0x4, fixed_abs, tag = 'smem constant byte address 0x4 - core index']
  #allocation1 [shape = 'u32[144,128]{1,0:T(1,128)}', space=vmem, size = 0x12000, scoped, tag = 'internal scratch']
  #allocation2 [shape = 'f32[2,1,256]{2,1,0:T(1,128)}', space=vmem, size = 0x800, scoped, tag = 'scratch operand']
  %s0 = inlined_call_operand.hbm [shape: f32[2,4,256], index: 0, kind: input, shape index: {}]
  %s1 = inlined_call_operand.hbm [shape: f32[7,7], index: 1, kind: input, shape index: {}]
  %s2 = inlined_call_operand.vmem [shape: s32[1,256], index: 2, kind: input, shape index: {}]
  %s3 = inlined_call_operand.hbm [shape: f32[2,256], index: 3, kind: output, shape index: {}]
  %s4 = sld [smem:[#allocation0]]
  $region42: #{tpu_custom_call.1} parent=0
    _
  %s6 = ssub.s32 1, %s4
  %s7 = scalar_select 0, %s6, %s4
  $region1: #{tpu_custom_call.1} parent=0
    #allocation3 [shape = 'u8[8192]{0}', space=vmem, size = 0x2000, scoped, tag = 'input window, operand 0, single buffered']
    #allocation4 [shape = 's32[1]{0}', space=sflag, size = 0x4, scoped, tag = 'scoped memory for tpu_custom_call.1']
    #allocation5 [shape = 's32[1]{0}', space=sflag, size = 0x4, scoped, tag = 'scoped memory for tpu_custom_call.1']
    #allocation6 [shape = 's32[1]{0}', space=sflag, size = 0x4, scoped, tag = 'scoped memory for tpu_custom_call.1']
    #allocation7 [shape = 'u8[4096]{0}', space=smem, size = 0x1000, scoped, tag = 'input window, operand 1, single buffered']
    #allocation8 [shape = 'u8[2048]{0}', space=vmem, size = 0x800, scoped, tag = 'output window, operand 0, single buffered']
    %8 = vsyncpa [#allocation4], 0
    %9 = vsyncpa [#allocation6], 0
    %10 = vsyncpa [#allocation5], 0
    // Predicated region
    $region2: #{tpu_custom_call.1} parent=1 // pred_check
      _
    $region3: #{tpu_custom_call.1} parent=1 // pred_check_branch
      %12 = sbr.rel (0) target = $region5
    $region4: #{tpu_custom_call.1} parent=1 // pred_region
      %s14 = ssub.s32 256, 256
      %15 = vsyncadd [#allocation4], %s14
      %s16 = sshll.u32 [#allocation3], 4
      %s17 = int_to_ptr.vmem [resolvable:$true] %s16
      %22 = dma.hbm_to_vmem [thread:$0]  %s0, 256, %s17, [#allocation4], 128, 128, 8
    $region5: #{tpu_custom_call.1} parent=1 // pred_fallthru
      _
    // Predicated region
    $region6: #{tpu_custom_call.1} parent=1 // pred_check
      _
    $region7: #{tpu_custom_call.1} parent=1 // pred_check_branch
      %24 = sbr.rel (0) target = $region9
    $region8: #{tpu_custom_call.1} parent=1 // pred_region
      %s26 = ssub.s32 128, 128
      %27 = vsyncadd [#allocation6], %s26
      %30 = dma.hbm_to_smem %s1, 128, [#allocation7], [#allocation6]
    $region9: #{tpu_custom_call.1} parent=1 // pred_fallthru
      _
    // Predicated region
    $region10: #{tpu_custom_call.1} parent=1 // pred_check
      _
    $region11: #{tpu_custom_call.1} parent=1 // pred_check_branch
      %32 = sbr.rel (0) target = $region13
    $region12: #{tpu_custom_call.1} parent=1 // pred_region
      _
    $region13: #{tpu_custom_call.1} parent=1 // pred_fallthru
      _
    // Predicated region
    $region14: #{tpu_custom_call.1} parent=1 // pred_check
      _
    $region15: #{tpu_custom_call.1} parent=1 // pred_check_branch
      %34 = sbr.rel (0) target = $region17
    $region16: #{tpu_custom_call.1} parent=1 // pred_region
      %35 = dma.done [#allocation4], 256
    $region17: #{tpu_custom_call.1} parent=1 // pred_fallthru
      _
    // Predicated region
    $region18: #{tpu_custom_call.1} parent=1 // pred_check
      _
    $region19: #{tpu_custom_call.1} parent=1 // pred_check_branch
      %37 = sbr.rel (0) target = $region21
    $region20: #{tpu_custom_call.1} parent=1 // pred_region
      %38 = dma.done [#allocation6], 128
    $region21: #{tpu_custom_call.1} parent=1 // pred_fallthru
      _
    %39 = sfence
    %v40 = vld [vmem:[#allocation3] sm:$0xff]
    %v41 = vld [vmem:[#allocation3 + $0x8] sm:$0xff]
    %v44 = vcombine.high %v40, %v40
    %v45 = vcombine.high %v41, %v41
    %vm48 = vcmask 1043456
    %v49 = vsel %vm48, %v40, -inf
    %v50 = vrot.slane %v49, 4
    %v51 = vmax.f32 %v49, %v50
    %v52 = vrot.slane %v51, 2
    %v53 = vmax.f32 %v51, %v52
    %v54 = vrot.slane %v53, 1
    %v55 = vmax.f32 %v53, %v54
    %v56 = vsel %vm48, %v44, -inf
    %v57 = vrot.slane %v56, 4
    %v58 = vmax.f32 %v56, %v57
    %v59 = vrot.slane %v58, 2
    %v60 = vmax.f32 %v58, %v59
    %v61 = vrot.slane %v60, 1
    %v62 = vmax.f32 %v60, %v61
    %v63 = vsel %vm48, %v41, -inf
    %v64 = vrot.slane %v63, 4
    %v65 = vmax.f32 %v63, %v64
    %v66 = vrot.slane %v65, 2
    %v67 = vmax.f32 %v65, %v66
    %v68 = vrot.slane %v67, 1
    %v69 = vmax.f32 %v67, %v68
    %v70 = vsel %vm48, %v45, -inf
    %v71 = vrot.slane %v70, 4
    %v72 = vmax.f32 %v70, %v71
    %v73 = vrot.slane %v72, 2
    %v74 = vmax.f32 %v72, %v73
    %v75 = vrot.slane %v74, 1
    %v76 = vmax.f32 %v74, %v75
    %p77 = scmp.eq.s32.totalorder 0, 0
    // Predicated region
    $region22: #{tpu_custom_call.1} parent=1 // pred_check
      %p78 = pneg %p77
    $region23: #{tpu_custom_call.1} parent=1 // pred_check_branch
      %80 = sbr.rel (%p78) target = $region25
    $region24: #{tpu_custom_call.1} parent=1 // pred_region
      %v85 = vcombine.low %v55, %v62
      %v87 = vunpack.c.l.s4 1966171168
      %v88 = vunpack.c.0.s8 %v87
      %v89 = vlaneseq
      %v90 = vshrl.u32 %v89, 7
      %v91 = vsub.s32 %v88, %v90
      %v92 = vrot.slane %v85, %v91
      %v94 = vunpack.c.l.s4 1966171168
      %v95 = vunpack.c.0.s8 %v94
      %v96 = vlaneseq
      %v97 = vshrl.u32 %v96, 7
      %v98 = vsub.s32 %v95, %v97
      %v99 = vrot.slane %v92, %v98
      %v100 = vcombine.low %v69, %v76
      %v102 = vunpack.c.l.s4 1966171168
      %v103 = vunpack.c.0.s8 %v102
      %v104 = vlaneseq
      %v105 = vshrl.u32 %v104, 7
      %v106 = vsub.s32 %v103, %v105
      %v107 = vrot.slane %v100, %v106
      %v109 = vunpack.c.l.s4 1966171168
      %v110 = vunpack.c.0.s8 %v109
      %v111 = vlaneseq
      %v112 = vshrl.u32 %v111, 7
      %v113 = vsub.s32 %v110, %v112
      %v114 = vrot.slane %v107, %v113
      %v117 = vlaneseq
      %vm118 = vcmp.ge.s32.totalorder %v117, 0
      %vm119 = vcmp.lt.s32.totalorder %v117, 256
      %vm120 = vmand %vm118, %vm119
      %121 = vst.msk [vmem:[#allocation2] sm:$0x3] %vm120, %v99
      %122 = vst.msk [vmem:[#allocation2 + $0x2] sm:$0x3] %vm120, %v114
    $region25: #{tpu_custom_call.1} parent=1 // pred_fallthru
      _
    %p123 = scmp.gt.s32.totalorder 0, 0
    // Predicated region
    $region26: #{tpu_custom_call.1} parent=1 // pred_check
      %p124 = pneg %p123
    $region27: #{tpu_custom_call.1} parent=1 // pred_check_branch
      %126 = sbr.rel (%p124) target = $region29
    $region28: #{tpu_custom_call.1} parent=1 // pred_region
      %v127 = vld [vmem:[#allocation2] sm:$0x3]
      %v128 = vld [vmem:[#allocation2 + $0x2] sm:$0x3]
      %v133 = vcombine.low %v55, %v62
      %v135 = vunpack.c.l.s4 1966171168
      %v136 = vunpack.c.0.s8 %v135
      %v137 = vlaneseq
      %v138 = vshrl.u32 %v137, 7
      %v139 = vsub.s32 %v136, %v138
      %v140 = vrot.slane %v133, %v139
      %v142 = vunpack.c.l.s4 1966171168
      %v143 = vunpack.c.0.s8 %v142
      %v144 = vlaneseq
      %v145 = vshrl.u32 %v144, 7
      %v146 = vsub.s32 %v143, %v145
      %v147 = vrot.slane %v140, %v146
      %v148 = vcombine.low %v69, %v76
      %v150 = vunpack.c.l.s4 1966171168
      %v151 = vunpack.c.0.s8 %v150
      %v152 = vlaneseq
      %v153 = vshrl.u32 %v152, 7
      %v154 = vsub.s32 %v151, %v153
      %v155 = vrot.slane %v148, %v154
      %v157 = vunpack.c.l.s4 1966171168
      %v158 = vunpack.c.0.s8 %v157
      %v159 = vlaneseq
      %v160 = vshrl.u32 %v159, 7
      %v161 = vsub.s32 %v158, %v160
      %v162 = vrot.slane %v155, %v161
      %v165 = vmax.f32 %v127, %v147
      %v166 = vmax.f32 %v128, %v162
      %v167 = vlaneseq
      %vm168 = vcmp.ge.s32.totalorder %v167, 0
      %vm169 = vcmp.lt.s32.totalorder %v167, 256
      %vm170 = vmand %vm168, %vm169
      %171 = vst.msk [vmem:[#allocation2] sm:$0x3] %vm170, %v165
      %172 = vst.msk [vmem:[#allocation2 + $0x2] sm:$0x3] %vm170, %v166
    $region29: #{tpu_custom_call.1} parent=1 // pred_fallthru
      _
    // Predicated region
    $region30: #{tpu_custom_call.1} parent=1 // pred_check
      %p173 = pneg %p77
    $region31: #{tpu_custom_call.1} parent=1 // pred_check_branch
      %175 = sbr.rel (%p173) target = $region33
    $region32: #{tpu_custom_call.1} parent=1 // pred_region
      %v176 = vld [vmem:[#allocation2] sm:$0x3]
      %v177 = vld [vmem:[#allocation2 + $0x2] sm:$0x3]
      %v178 = vlaneseq
      %v179 = vand.u32 %v178, 127
      %v180 = vadd.s32 %v179, 128
      %v181 = vld [vmem:[%s2] sm:$0x3]
      %v182 = vadd.s32 %v181, 4294967293
      %vm183 = vcmp.ge.s32.totalorder %v182, 0
      %vm184 = vcmp.lt.s32.totalorder %v182, 16
      %vm185 = vmand %vm183, %vm184
      %v186 = vsel %vm185, 1, 0
      %v187 = vlaneseq
      %v188 = vshrl.u32 %v187, 7
      %v189 = vsub.s32 0, %v188
      %v190 = vrot.slane %v186, %v189
      %v191 = vlaneseq
      %v192 = vshrl.u32 %v191, 7
      %v193 = vsub.s32 1, %v192
      %v194 = vrot.slane %v186, %v193
      %vm195 = vcmp.eq.s32.totalorder %v190, 1
      %vm196 = vcmp.eq.s32.totalorder %v194, 1
      %v199 = vcombine.low %v176, %v177
      %v201 = vunpack.c.l.s4 1966171168
      %v202 = vunpack.c.0.s8 %v201
      %v203 = vlaneseq
      %v204 = vshrl.u32 %v203, 7
      %v205 = vsub.s32 %v202, %v204
      %v206 = vrot.slane %v199, %v205
      %v207 = vcombine.high %v206, %v206
      %v209 = vunpack.c.l.s4 1966171168
      %v210 = vunpack.c.0.s8 %v209
      %v211 = vlaneseq
      %v212 = vshrl.u32 %v211, 7
      %v213 = vsub.s32 %v210, %v212
      %v214 = vrot.slane %v206, %v213
      %v216 = vunpack.c.l.s4 1966171168
      %v217 = vunpack.c.0.s8 %v216
      %v218 = vlaneseq
      %v219 = vshrl.u32 %v218, 7
      %v220 = vsub.s32 %v217, %v219
      %v221 = vrot.slane %v207, %v220
      %224 = vrot.lane.b32.xlu0 %v214, 3
      %v225 = vpop.permute.xlu0 %224
      %226 = vrot.lane.b32.xlu0 %v221, 3
      %v227 = vpop.permute.xlu0 %226
      %vm228 = vcmp.lt.s32.totalorder %v179, 3
      %v229 = vsel %vm228, %v225, %v227
      %v230 = vsel %vm228, %v227, %v225
      %v231 = vsel %vm195, %v230, 0.0
      %v232 = vsel %vm196, %v229, 0.0
      %v233 = vadd.s32 %v181, 4294967294
      %vm234 = vcmp.ge.s32.totalorder %v233, 0
      %vm235 = vcmp.lt.s32.totalorder %v233, 16
      %vm236 = vmand %vm234, %vm235
      %v237 = vsel %vm236, 1, 0
      %v238 = vlaneseq
      %v239 = vshrl.u32 %v238, 7
      %v240 = vsub.s32 0, %v239
      %v241 = vrot.slane %v237, %v240
      %v242 = vlaneseq
      %v243 = vshrl.u32 %v242, 7
      %v244 = vsub.s32 1, %v243
      %v245 = vrot.slane %v237, %v244
      %vm246 = vcmp.eq.s32.totalorder %v241, 1
      %vm247 = vcmp.eq.s32.totalorder %v245, 1
      %248 = vrot.lane.b32.xlu0 %v214, 2
      %v249 = vpop.permute.xlu0 %248
      %250 = vrot.lane.b32.xlu0 %v221, 2
      %v251 = vpop.permute.xlu0 %250
      %vm252 = vcmp.lt.s32.totalorder %v179, 2
      %v253 = vsel %vm252, %v249, %v251
      %v254 = vsel %vm252, %v251, %v249
      %v255 = vsel %vm246, %v254, 0.0
      %v256 = vsel %vm247, %v253, 0.0
      %v257 = vadd.s32 %v181, 4294967295
      %vm258 = vcmp.ge.s32.totalorder %v257, 0
      %vm259 = vcmp.lt.s32.totalorder %v257, 16
      %vm260 = vmand %vm258, %vm259
      %v261 = vsel %vm260, 1, 0
      %v262 = vlaneseq
      %v263 = vshrl.u32 %v262, 7
      %v264 = vsub.s32 0, %v263
      %v265 = vrot.slane %v261, %v264
      %v266 = vlaneseq
      %v267 = vshrl.u32 %v266, 7
      %v268 = vsub.s32 1, %v267
      %v269 = vrot.slane %v261, %v268
      %vm270 = vcmp.eq.s32.totalorder %v265, 1
      %vm271 = vcmp.eq.s32.totalorder %v269, 1
      %272 = vrot.lane.b32.xlu0 %v214, 1
      %v273 = vpop.permute.xlu0 %272
      %274 = vrot.lane.b32.xlu0 %v221, 1
      %v275 = vpop.permute.xlu0 %274
      %vm276 = vcmp.lt.s32.totalorder %v179, 1
      %v277 = vsel %vm276, %v273, %v275
      %v278 = vsel %vm276, %v275, %v273
      %v279 = vsel %vm270, %v278, 0.0
      %v280 = vsel %vm271, %v277, 0.0
      %v281 = vadd.s32 %v181, 1
      %vm282 = vcmp.ge.s32.totalorder %v281, 0
      %vm283 = vcmp.lt.s32.totalorder %v281, 16
      %vm284 = vmand %vm282, %vm283
      %v285 = vsel %vm284, 1, 0
      %v286 = vlaneseq
      %v287 = vshrl.u32 %v286, 7
      %v288 = vsub.s32 0, %v287
      %v289 = vrot.slane %v285, %v288
      %v290 = vlaneseq
      %v291 = vshrl.u32 %v290, 7
      %v292 = vsub.s32 1, %v291
      %v293 = vrot.slane %v285, %v292
      %vm294 = vcmp.eq.s32.totalorder %v289, 1
      %vm295 = vcmp.eq.s32.totalorder %v293, 1
      %296 = vrot.lane.b32.xlu0 %v214, 127
      %v297 = vpop.permute.xlu0 %296
      %298 = vrot.lane.b32.xlu0 %v221, 127
      %v299 = vpop.permute.xlu0 %298
      %vm300 = vcmp.lt.s32.totalorder %v179, 127
      %v301 = vsel %vm300, %v297, %v299
      %v302 = vsel %vm300, %v299, %v297
      %v303 = vsel %vm294, %v301, 0.0
      %v304 = vsel %vm295, %v302, 0.0
      %v305 = vadd.s32 %v181, 2
      %vm306 = vcmp.ge.s32.totalorder %v305, 0
      %vm307 = vcmp.lt.s32.totalorder %v305, 16
      %vm308 = vmand %vm306, %vm307
      %v309 = vsel %vm308, 1, 0
      %v310 = vlaneseq
      %v311 = vshrl.u32 %v310, 7
      %v312 = vsub.s32 0, %v311
      %v313 = vrot.slane %v309, %v312
      %v314 = vlaneseq
      %v315 = vshrl.u32 %v314, 7
      %v316 = vsub.s32 1, %v315
      %v317 = vrot.slane %v309, %v316
      %vm318 = vcmp.eq.s32.totalorder %v313, 1
      %vm319 = vcmp.eq.s32.totalorder %v317, 1
      %320 = vrot.lane.b32.xlu0 %v214, 126
      %v321 = vpop.permute.xlu0 %320
      %322 = vrot.lane.b32.xlu0 %v221, 126
      %v323 = vpop.permute.xlu0 %322
      %vm324 = vcmp.lt.s32.totalorder %v179, 126
      %v325 = vsel %vm324, %v321, %v323
      %v326 = vsel %vm324, %v323, %v321
      %v327 = vsel %vm318, %v325, 0.0
      %v328 = vsel %vm319, %v326, 0.0
      %v329 = vadd.s32 %v181, 3
      %vm330 = vcmp.ge.s32.totalorder %v329, 0
      %vm331 = vcmp.lt.s32.totalorder %v329, 16
      %vm332 = vmand %vm330, %vm331
      %v333 = vsel %vm332, 1, 0
      %v334 = vlaneseq
      %v335 = vshrl.u32 %v334, 7
      %v336 = vsub.s32 0, %v335
      %v337 = vrot.slane %v333, %v336
      %v338 = vlaneseq
      %v339 = vshrl.u32 %v338, 7
      %v340 = vsub.s32 1, %v339
      %v341 = vrot.slane %v333, %v340
      %vm342 = vcmp.eq.s32.totalorder %v337, 1
      %vm343 = vcmp.eq.s32.totalorder %v341, 1
      %344 = vrot.lane.b32.xlu0 %v214, 125
      %v345 = vpop.permute.xlu0 %344
      %346 = vrot.lane.b32.xlu0 %v221, 125
      %v347 = vpop.permute.xlu0 %346
      %vm348 = vcmp.lt.s32.totalorder %v179, 125
      %v349 = vsel %vm348, %v345, %v347
      %v350 = vsel %vm348, %v347, %v345
      %v351 = vsel %vm342, %v349, 0.0
      %v352 = vsel %vm343, %v350, 0.0
      %s353 = sld [smem:[#allocation7]]
      %v354 = vstv %s353
      %v355 = vmul.f32 %v354, %v231
      %v356 = vmul.f32 %v354, %v232
      %s357 = sld [smem:[#allocation7 + $0x1]]
      %v358 = vstv %s357
      %v359 = vmul.f32 %v358, %v255
      %v360 = vmul.f32 %v358, %v256
      %v361 = vadd.f32 %v355, %v359
      %v362 = vadd.f32 %v356, %v360
      %s363 = sld [smem:[#allocation7 + $0x2]]
      %v364 = vstv %s363
      %v365 = vmul.f32 %v364, %v279
      %v366 = vmul.f32 %v364, %v280
      %v367 = vadd.f32 %v361, %v365
      %v368 = vadd.f32 %v362, %v366
      %s369 = sld [smem:[#allocation7 + $0x3]]
      %v370 = vstv %s369
      %v371 = vmul.f32 %v370, %v176
      %v372 = vmul.f32 %v370, %v177
      %v375 = vcombine.low %v371, %v372
      %v377 = vunpack.c.l.s4 1966171168
      %v378 = vunpack.c.0.s8 %v377
      %v379 = vlaneseq
      %v380 = vshrl.u32 %v379, 7
      %v381 = vsub.s32 %v378, %v380
      %v382 = vrot.slane %v375, %v381
      %v383 = vcombine.high %v382, %v382
      %v385 = vunpack.c.l.s4 1966171168
      %v386 = vunpack.c.0.s8 %v385
      %v387 = vlaneseq
      %v388 = vshrl.u32 %v387, 7
      %v389 = vsub.s32 %v386, %v388
      %v390 = vrot.slane %v382, %v389
      %v392 = vunpack.c.l.s4 1966171168
      %v393 = vunpack.c.0.s8 %v392
      %v394 = vlaneseq
      %v395 = vshrl.u32 %v394, 7
      %v396 = vsub.s32 %v393, %v395
      %v397 = vrot.slane %v383, %v396
      %v400 = vadd.f32 %v367, %v390
      %v401 = vadd.f32 %v368, %v397
      %s402 = sld [smem:[#allocation7 + $0x4]]
      %v403 = vstv %s402
      %v404 = vmul.f32 %v403, %v303
      %v405 = vmul.f32 %v403, %v304
      %v406 = vadd.f32 %v400, %v404
      %v407 = vadd.f32 %v401, %v405
      %s408 = sld [smem:[#allocation7 + $0x5]]
      %v409 = vstv %s408
      %v410 = vmul.f32 %v409, %v327
      %v411 = vmul.f32 %v409, %v328
      %v412 = vadd.f32 %v406, %v410
      %v413 = vadd.f32 %v407, %v411
      %s414 = sld [smem:[#allocation7 + $0x6]]
      %v415 = vstv %s414
      %v416 = vmul.f32 %v415, %v351
      %v417 = vmul.f32 %v415, %v352
      %v418 = vadd.f32 %v412, %v416
      %v419 = vadd.f32 %v413, %v417
      %vm420 = vcmp.ge.s32.totalorder %v179, 48
      %vm421 = vcmp.ge.s32.totalorder %v180, 48
      %vm422 = vcmp.lt.s32.totalorder %v179, 304
      %vm423 = vcmp.lt.s32.totalorder %v180, 304
      %vm424 = vmand %vm420, %vm422
      %vm425 = vmand %vm421, %vm423
      %v426 = vsel %vm424, 1, 0
      %v427 = vsel %vm425, 1, 0
      %vm428 = vcmp.eq.s32.totalorder %v426, 1
      %vm429 = vcmp.eq.s32.totalorder %v427, 1
      %430 = vrot.lane.b32.xlu0 %v418, 48
      %v431 = vpop.permute.xlu0 %430
      %432 = vrot.lane.b32.xlu0 %v419, 48
      %v433 = vpop.permute.xlu0 %432
      %vm434 = vcmp.lt.s32.totalorder %v179, 48
      %v435 = vsel %vm434, %v431, %v433
      %v436 = vsel %vm434, %v433, %v431
      %v437 = vsel %vm428, %v436, 0.0
      %v438 = vsel %vm429, %v435, 0.0
      %s439 = sld [smem:[#allocation7 + $0x80]]
      %v440 = vstv %s439
      %v441 = vmul.f32 %v440, %v231
      %v442 = vmul.f32 %v440, %v232
      %s443 = sld [smem:[#allocation7 + $0x81]]
      %v444 = vstv %s443
      %v445 = vmul.f32 %v444, %v255
      %v446 = vmul.f32 %v444, %v256
      %v447 = vadd.f32 %v441, %v445
      %v448 = vadd.f32 %v442, %v446
      %s449 = sld [smem:[#allocation7 + $0x82]]
      %v450 = vstv %s449
      %v451 = vmul.f32 %v450, %v279
      %v452 = vmul.f32 %v450, %v280
      %v453 = vadd.f32 %v447, %v451
      %v454 = vadd.f32 %v448, %v452
      %s455 = sld [smem:[#allocation7 + $0x83]]
      %v456 = vstv %s455
      %v457 = vmul.f32 %v456, %v176
      %v458 = vmul.f32 %v456, %v177
      %v461 = vcombine.low %v457, %v458
      %v463 = vunpack.c.l.s4 1966171168
      %v464 = vunpack.c.0.s8 %v463
      %v465 = vlaneseq
      %v466 = vshrl.u32 %v465, 7
      %v467 = vsub.s32 %v464, %v466
      %v468 = vrot.slane %v461, %v467
      %v469 = vcombine.high %v468, %v468
      %v471 = vunpack.c.l.s4 1966171168
      %v472 = vunpack.c.0.s8 %v471
      %v473 = vlaneseq
      %v474 = vshrl.u32 %v473, 7
      %v475 = vsub.s32 %v472, %v474
      %v476 = vrot.slane %v468, %v475
      %v478 = vunpack.c.l.s4 1966171168
      %v479 = vunpack.c.0.s8 %v478
      %v480 = vlaneseq
      %v481 = vshrl.u32 %v480, 7
      %v482 = vsub.s32 %v479, %v481
      %v483 = vrot.slane %v469, %v482
      %v486 = vadd.f32 %v453, %v476
      %v487 = vadd.f32 %v454, %v483
      %s488 = sld [smem:[#allocation7 + $0x84]]
      %v489 = vstv %s488
      %v490 = vmul.f32 %v489, %v303
      %v491 = vmul.f32 %v489, %v304
      %v492 = vadd.f32 %v486, %v490
      %v493 = vadd.f32 %v487, %v491
      %s494 = sld [smem:[#allocation7 + $0x85]]
      %v495 = vstv %s494
      %v496 = vmul.f32 %v495, %v327
      %v497 = vmul.f32 %v495, %v328
      %v498 = vadd.f32 %v492, %v496
      %v499 = vadd.f32 %v493, %v497
      %s500 = sld [smem:[#allocation7 + $0x86]]
      %v501 = vstv %s500
      %v502 = vmul.f32 %v501, %v351
      %v503 = vmul.f32 %v501, %v352
      %v504 = vadd.f32 %v498, %v502
      %v505 = vadd.f32 %v499, %v503
      %vm506 = vcmp.ge.s32.totalorder %v179, 32
      %vm507 = vcmp.ge.s32.totalorder %v180, 32
      %vm508 = vcmp.lt.s32.totalorder %v179, 288
      %vm509 = vcmp.lt.s32.totalorder %v180, 288
      %vm510 = vmand %vm506, %vm508
      %vm511 = vmand %vm507, %vm509
      %v512 = vsel %vm510, 1, 0
      %v513 = vsel %vm511, 1, 0
      %vm514 = vcmp.eq.s32.totalorder %v512, 1
      %vm515 = vcmp.eq.s32.totalorder %v513, 1
      %516 = vrot.lane.b32.xlu0 %v504, 32
      %v517 = vpop.permute.xlu0 %516
      %518 = vrot.lane.b32.xlu0 %v505, 32
      %v519 = vpop.permute.xlu0 %518
      %vm520 = vcmp.lt.s32.totalorder %v179, 32
      %v521 = vsel %vm520, %v517, %v519
      %v522 = vsel %vm520, %v519, %v517
      %v523 = vsel %vm514, %v522, 0.0
      %v524 = vsel %vm515, %v521, 0.0
      %v525 = vadd.f32 %v437, %v523
      %v526 = vadd.f32 %v438, %v524
      %s527 = sld [smem:[#allocation7 + $0x100]]
      %v528 = vstv %s527
      %v529 = vmul.f32 %v528, %v231
      %v530 = vmul.f32 %v528, %v232
      %s531 = sld [smem:[#allocation7 + $0x101]]
      %v532 = vstv %s531
      %v533 = vmul.f32 %v532, %v255
      %v534 = vmul.f32 %v532, %v256
      %v535 = vadd.f32 %v529, %v533
      %v536 = vadd.f32 %v530, %v534
      %s537 = sld [smem:[#allocation7 + $0x102]]
      %v538 = vstv %s537
      %v539 = vmul.f32 %v538, %v279
      %v540 = vmul.f32 %v538, %v280
      %v541 = vadd.f32 %v535, %v539
      %v542 = vadd.f32 %v536, %v540
      %s543 = sld [smem:[#allocation7 + $0x103]]
      %v544 = vstv %s543
      %v545 = vmul.f32 %v544, %v176
      %v546 = vmul.f32 %v544, %v177
      %v549 = vcombine.low %v545, %v546
      %v551 = vunpack.c.l.s4 1966171168
      %v552 = vunpack.c.0.s8 %v551
      %v553 = vlaneseq
      %v554 = vshrl.u32 %v553, 7
      %v555 = vsub.s32 %v552, %v554
      %v556 = vrot.slane %v549, %v555
      %v557 = vcombine.high %v556, %v556
      %v559 = vunpack.c.l.s4 1966171168
      %v560 = vunpack.c.0.s8 %v559
      %v561 = vlaneseq
      %v562 = vshrl.u32 %v561, 7
      %v563 = vsub.s32 %v560, %v562
      %v564 = vrot.slane %v556, %v563
      %v566 = vunpack.c.l.s4 1966171168
      %v567 = vunpack.c.0.s8 %v566
      %v568 = vlaneseq
      %v569 = vshrl.u32 %v568, 7
      %v570 = vsub.s32 %v567, %v569
      %v571 = vrot.slane %v557, %v570
      %v574 = vadd.f32 %v541, %v564
      %v575 = vadd.f32 %v542, %v571
      %s576 = sld [smem:[#allocation7 + $0x104]]
      %v577 = vstv %s576
      %v578 = vmul.f32 %v577, %v303
      %v579 = vmul.f32 %v577, %v304
      %v580 = vadd.f32 %v574, %v578
      %v581 = vadd.f32 %v575, %v579
      %s582 = sld [smem:[#allocation7 + $0x105]]
      %v583 = vstv %s582
      %v584 = vmul.f32 %v583, %v327
      %v585 = vmul.f32 %v583, %v328
      %v586 = vadd.f32 %v580, %v584
      %v587 = vadd.f32 %v581, %v585
      %s588 = sld [smem:[#allocation7 + $0x106]]
      %v589 = vstv %s588
      %v590 = vmul.f32 %v589, %v351
      %v591 = vmul.f32 %v589, %v352
      %v592 = vadd.f32 %v586, %v590
      %v593 = vadd.f32 %v587, %v591
      %vm594 = vcmp.ge.s32.totalorder %v179, 16
      %vm595 = vcmp.ge.s32.totalorder %v180, 16
      %vm596 = vcmp.lt.s32.totalorder %v179, 272
      %vm597 = vcmp.lt.s32.totalorder %v180, 272
      %vm598 = vmand %vm594, %vm596
      %vm599 = vmand %vm595, %vm597
      %v600 = vsel %vm598, 1, 0
      %v601 = vsel %vm599, 1, 0
      %vm602 = vcmp.eq.s32.totalorder %v600, 1
      %vm603 = vcmp.eq.s32.totalorder %v601, 1
      %604 = vrot.lane.b32.xlu0 %v592, 16
      %v605 = vpop.permute.xlu0 %604
      %606 = vrot.lane.b32.xlu0 %v593, 16
      %v607 = vpop.permute.xlu0 %606
      %vm608 = vcmp.lt.s32.totalorder %v179, 16
      %v609 = vsel %vm608, %v605, %v607
      %v610 = vsel %vm608, %v607, %v605
      %v611 = vsel %vm602, %v610, 0.0
      %v612 = vsel %vm603, %v609, 0.0
      %v613 = vadd.f32 %v525, %v611
      %v614 = vadd.f32 %v526, %v612
      %s615 = sld [smem:[#allocation7 + $0x180]]
      %v616 = vstv %s615
      %v617 = vmul.f32 %v616, %v231
      %v618 = vmul.f32 %v616, %v232
      %s619 = sld [smem:[#allocation7 + $0x181]]
      %v620 = vstv %s619
      %v621 = vmul.f32 %v620, %v255
      %v622 = vmul.f32 %v620, %v256
      %v623 = vadd.f32 %v617, %v621
      %v624 = vadd.f32 %v618, %v622
      %s625 = sld [smem:[#allocation7 + $0x182]]
      %v626 = vstv %s625
      %v627 = vmul.f32 %v626, %v279
      %v628 = vmul.f32 %v626, %v280
      %v629 = vadd.f32 %v623, %v627
      %v630 = vadd.f32 %v624, %v628
      %s631 = sld [smem:[#allocation7 + $0x183]]
      %v632 = vstv %s631
      %v633 = vmul.f32 %v632, %v176
      %v634 = vmul.f32 %v632, %v177
      %v637 = vcombine.low %v633, %v634
      %v639 = vunpack.c.l.s4 1966171168
      %v640 = vunpack.c.0.s8 %v639
      %v641 = vlaneseq
      %v642 = vshrl.u32 %v641, 7
      %v643 = vsub.s32 %v640, %v642
      %v644 = vrot.slane %v637, %v643
      %v645 = vcombine.high %v644, %v644
      %v647 = vunpack.c.l.s4 1966171168
      %v648 = vunpack.c.0.s8 %v647
      %v649 = vlaneseq
      %v650 = vshrl.u32 %v649, 7
      %v651 = vsub.s32 %v648, %v650
      %v652 = vrot.slane %v644, %v651
      %v654 = vunpack.c.l.s4 1966171168
      %v655 = vunpack.c.0.s8 %v654
      %v656 = vlaneseq
      %v657 = vshrl.u32 %v656, 7
      %v658 = vsub.s32 %v655, %v657
      %v659 = vrot.slane %v645, %v658
      %v662 = vadd.f32 %v629, %v652
      %v663 = vadd.f32 %v630, %v659
      %s664 = sld [smem:[#allocation7 + $0x184]]
      %v665 = vstv %s664
      %v666 = vmul.f32 %v665, %v303
      %v667 = vmul.f32 %v665, %v304
      %v668 = vadd.f32 %v662, %v666
      %v669 = vadd.f32 %v663, %v667
      %s670 = sld [smem:[#allocation7 + $0x185]]
      %v671 = vstv %s670
      %v672 = vmul.f32 %v671, %v327
      %v673 = vmul.f32 %v671, %v328
      %v674 = vadd.f32 %v668, %v672
      %v675 = vadd.f32 %v669, %v673
      %s676 = sld [smem:[#allocation7 + $0x186]]
      %v677 = vstv %s676
      %v678 = vmul.f32 %v677, %v351
      %v679 = vmul.f32 %v677, %v352
      %v680 = vadd.f32 %v674, %v678
      %v681 = vadd.f32 %v675, %v679
      %v682 = vadd.f32 %v613, %v680
      %v683 = vadd.f32 %v614, %v681
      %s684 = sld [smem:[#allocation7 + $0x200]]
      %v685 = vstv %s684
      %v686 = vmul.f32 %v685, %v231
      %v687 = vmul.f32 %v685, %v232
      %s688 = sld [smem:[#allocation7 + $0x201]]
      %v689 = vstv %s688
      %v690 = vmul.f32 %v689, %v255
      %v691 = vmul.f32 %v689, %v256
      %v692 = vadd.f32 %v686, %v690
      %v693 = vadd.f32 %v687, %v691
      %s694 = sld [smem:[#allocation7 + $0x202]]
      %v695 = vstv %s694
      %v696 = vmul.f32 %v695, %v279
      %v697 = vmul.f32 %v695, %v280
      %v698 = vadd.f32 %v692, %v696
      %v699 = vadd.f32 %v693, %v697
      %s700 = sld [smem:[#allocation7 + $0x203]]
      %v701 = vstv %s700
      %v702 = vmul.f32 %v701, %v176
      %v703 = vmul.f32 %v701, %v177
      %v706 = vcombine.low %v702, %v703
      %v708 = vunpack.c.l.s4 1966171168
      %v709 = vunpack.c.0.s8 %v708
      %v710 = vlaneseq
      %v711 = vshrl.u32 %v710, 7
      %v712 = vsub.s32 %v709, %v711
      %v713 = vrot.slane %v706, %v712
      %v714 = vcombine.high %v713, %v713
      %v716 = vunpack.c.l.s4 1966171168
      %v717 = vunpack.c.0.s8 %v716
      %v718 = vlaneseq
      %v719 = vshrl.u32 %v718, 7
      %v720 = vsub.s32 %v717, %v719
      %v721 = vrot.slane %v713, %v720
      %v723 = vunpack.c.l.s4 1966171168
      %v724 = vunpack.c.0.s8 %v723
      %v725 = vlaneseq
      %v726 = vshrl.u32 %v725, 7
      %v727 = vsub.s32 %v724, %v726
      %v728 = vrot.slane %v714, %v727
      %v731 = vadd.f32 %v698, %v721
      %v732 = vadd.f32 %v699, %v728
      %s733 = sld [smem:[#allocation7 + $0x204]]
      %v734 = vstv %s733
      %v735 = vmul.f32 %v734, %v303
      %v736 = vmul.f32 %v734, %v304
      %v737 = vadd.f32 %v731, %v735
      %v738 = vadd.f32 %v732, %v736
      %s739 = sld [smem:[#allocation7 + $0x205]]
      %v740 = vstv %s739
      %v741 = vmul.f32 %v740, %v327
      %v742 = vmul.f32 %v740, %v328
      %v743 = vadd.f32 %v737, %v741
      %v744 = vadd.f32 %v738, %v742
      %s745 = sld [smem:[#allocation7 + $0x206]]
      %v746 = vstv %s745
      %v747 = vmul.f32 %v746, %v351
      %v748 = vmul.f32 %v746, %v352
      %v749 = vadd.f32 %v743, %v747
      %v750 = vadd.f32 %v744, %v748
      %vm751 = vcmp.ge.s32.totalorder %v179, 4294967280
      %vm752 = vcmp.ge.s32.totalorder %v180, 4294967280
      %vm753 = vcmp.lt.s32.totalorder %v179, 240
      %vm754 = vcmp.lt.s32.totalorder %v180, 240
      %vm755 = vmand %vm751, %vm753
      %vm756 = vmand %vm752, %vm754
      %v757 = vsel %vm755, 1, 0
      %v758 = vsel %vm756, 1, 0
      %vm759 = vcmp.eq.s32.totalorder %v757, 1
      %vm760 = vcmp.eq.s32.totalorder %v758, 1
      %761 = vrot.lane.b32.xlu0 %v749, 112
      %v762 = vpop.permute.xlu0 %761
      %763 = vrot.lane.b32.xlu0 %v750, 112
      %v764 = vpop.permute.xlu0 %763
      %vm765 = vcmp.lt.s32.totalorder %v179, 112
      %v766 = vsel %vm765, %v762, %v764
      %v767 = vsel %vm765, %v764, %v762
      %v768 = vsel %vm759, %v766, 0.0
      %v769 = vsel %vm760, %v767, 0.0
      %v770 = vadd.f32 %v682, %v768
      %v771 = vadd.f32 %v683, %v769
      %s772 = sld [smem:[#allocation7 + $0x280]]
      %v773 = vstv %s772
      %v774 = vmul.f32 %v773, %v231
      %v775 = vmul.f32 %v773, %v232
      %s776 = sld [smem:[#allocation7 + $0x281]]
      %v777 = vstv %s776
      %v778 = vmul.f32 %v777, %v255
      %v779 = vmul.f32 %v777, %v256
      %v780 = vadd.f32 %v774, %v778
      %v781 = vadd.f32 %v775, %v779
      %s782 = sld [smem:[#allocation7 + $0x282]]
      %v783 = vstv %s782
      %v784 = vmul.f32 %v783, %v279
      %v785 = vmul.f32 %v783, %v280
      %v786 = vadd.f32 %v780, %v784
      %v787 = vadd.f32 %v781, %v785
      %s788 = sld [smem:[#allocation7 + $0x283]]
      %v789 = vstv %s788
      %v790 = vmul.f32 %v789, %v176
      %v791 = vmul.f32 %v789, %v177
      %v794 = vcombine.low %v790, %v791
      %v796 = vunpack.c.l.s4 1966171168
      %v797 = vunpack.c.0.s8 %v796
      %v798 = vlaneseq
      %v799 = vshrl.u32 %v798, 7
      %v800 = vsub.s32 %v797, %v799
      %v801 = vrot.slane %v794, %v800
      %v802 = vcombine.high %v801, %v801
      %v804 = vunpack.c.l.s4 1966171168
      %v805 = vunpack.c.0.s8 %v804
      %v806 = vlaneseq
      %v807 = vshrl.u32 %v806, 7
      %v808 = vsub.s32 %v805, %v807
      %v809 = vrot.slane %v801, %v808
      %v811 = vunpack.c.l.s4 1966171168
      %v812 = vunpack.c.0.s8 %v811
      %v813 = vlaneseq
      %v814 = vshrl.u32 %v813, 7
      %v815 = vsub.s32 %v812, %v814
      %v816 = vrot.slane %v802, %v815
      %v819 = vadd.f32 %v786, %v809
      %v820 = vadd.f32 %v787, %v816
      %s821 = sld [smem:[#allocation7 + $0x284]]
      %v822 = vstv %s821
      %v823 = vmul.f32 %v822, %v303
      %v824 = vmul.f32 %v822, %v304
      %v825 = vadd.f32 %v819, %v823
      %v826 = vadd.f32 %v820, %v824
      %s827 = sld [smem:[#allocation7 + $0x285]]
      %v828 = vstv %s827
      %v829 = vmul.f32 %v828, %v327
      %v830 = vmul.f32 %v828, %v328
      %v831 = vadd.f32 %v825, %v829
      %v832 = vadd.f32 %v826, %v830
      %s833 = sld [smem:[#allocation7 + $0x286]]
      %v834 = vstv %s833
      %v835 = vmul.f32 %v834, %v351
      %v836 = vmul.f32 %v834, %v352
      %v837 = vadd.f32 %v831, %v835
      %v838 = vadd.f32 %v832, %v836
      %vm839 = vcmp.ge.s32.totalorder %v179, 4294967264
      %vm840 = vcmp.ge.s32.totalorder %v180, 4294967264
      %vm841 = vcmp.lt.s32.totalorder %v179, 224
      %vm842 = vcmp.lt.s32.totalorder %v180, 224
      %vm843 = vmand %vm839, %vm841
      %vm844 = vmand %vm840, %vm842
      %v845 = vsel %vm843, 1, 0
      %v846 = vsel %vm844, 1, 0
      %vm847 = vcmp.eq.s32.totalorder %v845, 1
      %vm848 = vcmp.eq.s32.totalorder %v846, 1
      %849 = vrot.lane.b32.xlu0 %v837, 96
      %v850 = vpop.permute.xlu0 %849
      %851 = vrot.lane.b32.xlu0 %v838, 96
      %v852 = vpop.permute.xlu0 %851
      %vm853 = vcmp.lt.s32.totalorder %v179, 96
      %v854 = vsel %vm853, %v850, %v852
      %v855 = vsel %vm853, %v852, %v850
      %v856 = vsel %vm847, %v854, 0.0
      %v857 = vsel %vm848, %v855, 0.0
      %v858 = vadd.f32 %v770, %v856
      %v859 = vadd.f32 %v771, %v857
      %s860 = sld [smem:[#allocation7 + $0x300]]
      %v861 = vstv %s860
      %v862 = vmul.f32 %v861, %v231
      %v863 = vmul.f32 %v861, %v232
      %s864 = sld [smem:[#allocation7 + $0x301]]
      %v865 = vstv %s864
      %v866 = vmul.f32 %v865, %v255
      %v867 = vmul.f32 %v865, %v256
      %v868 = vadd.f32 %v862, %v866
      %v869 = vadd.f32 %v863, %v867
      %s870 = sld [smem:[#allocation7 + $0x302]]
      %v871 = vstv %s870
      %v872 = vmul.f32 %v871, %v279
      %v873 = vmul.f32 %v871, %v280
      %v874 = vadd.f32 %v868, %v872
      %v875 = vadd.f32 %v869, %v873
      %s876 = sld [smem:[#allocation7 + $0x303]]
      %v877 = vstv %s876
      %v878 = vmul.f32 %v877, %v176
      %v879 = vmul.f32 %v877, %v177
      %v882 = vcombine.low %v878, %v879
      %v884 = vunpack.c.l.s4 1966171168
      %v885 = vunpack.c.0.s8 %v884
      %v886 = vlaneseq
      %v887 = vshrl.u32 %v886, 7
      %v888 = vsub.s32 %v885, %v887
      %v889 = vrot.slane %v882, %v888
      %v890 = vcombine.high %v889, %v889
      %v892 = vunpack.c.l.s4 1966171168
      %v893 = vunpack.c.0.s8 %v892
      %v894 = vlaneseq
      %v895 = vshrl.u32 %v894, 7
      %v896 = vsub.s32 %v893, %v895
      %v897 = vrot.slane %v889, %v896
      %v899 = vunpack.c.l.s4 1966171168
      %v900 = vunpack.c.0.s8 %v899
      %v901 = vlaneseq
      %v902 = vshrl.u32 %v901, 7
      %v903 = vsub.s32 %v900, %v902
      %v904 = vrot.slane %v890, %v903
      %v907 = vadd.f32 %v874, %v897
      %v908 = vadd.f32 %v875, %v904
      %s909 = sld [smem:[#allocation7 + $0x304]]
      %v910 = vstv %s909
      %v911 = vmul.f32 %v910, %v303
      %v912 = vmul.f32 %v910, %v304
      %v913 = vadd.f32 %v907, %v911
      %v914 = vadd.f32 %v908, %v912
      %s915 = sld [smem:[#allocation7 + $0x305]]
      %v916 = vstv %s915
      %v917 = vmul.f32 %v916, %v327
      %v918 = vmul.f32 %v916, %v328
      %v919 = vadd.f32 %v913, %v917
      %v920 = vadd.f32 %v914, %v918
      %s921 = sld [smem:[#allocation7 + $0x306]]
      %v922 = vstv %s921
      %v923 = vmul.f32 %v922, %v351
      %v924 = vmul.f32 %v922, %v352
      %v925 = vadd.f32 %v919, %v923
      %v926 = vadd.f32 %v920, %v924
      %vm927 = vcmp.ge.s32.totalorder %v179, 4294967248
      %vm928 = vcmp.ge.s32.totalorder %v180, 4294967248
      %vm929 = vcmp.lt.s32.totalorder %v179, 208
      %vm930 = vcmp.lt.s32.totalorder %v180, 208
      %vm931 = vmand %vm927, %vm929
      %vm932 = vmand %vm928, %vm930
      %v933 = vsel %vm931, 1, 0
      %v934 = vsel %vm932, 1, 0
      %vm935 = vcmp.eq.s32.totalorder %v933, 1
      %vm936 = vcmp.eq.s32.totalorder %v934, 1
      %937 = vrot.lane.b32.xlu0 %v925, 80
      %v938 = vpop.permute.xlu0 %937
      %939 = vrot.lane.b32.xlu0 %v926, 80
      %v940 = vpop.permute.xlu0 %939
      %vm941 = vcmp.lt.s32.totalorder %v179, 80
      %v942 = vsel %vm941, %v938, %v940
      %v943 = vsel %vm941, %v940, %v938
      %v944 = vsel %vm935, %v942, 0.0
      %v945 = vsel %vm936, %v943, 0.0
      %v946 = vadd.f32 %v858, %v944
      %v947 = vadd.f32 %v859, %v945
      %v948 = vsub.f32 0.0, %v946
      %v949 = vsub.f32 0.0, %v947
      %v950 = vmul.f32 %v948, 1.442695
      %v951 = vpow.pop %v950
      %v952 = vmul.f32 %v949, 1.442695
      %v953 = vpow.pop %v952
      %v954 = vadd.f32 %v951, 1.0
      %v955 = vadd.f32 %v953, 1.0
      %v956 = vrcp.pop %v954
      %v957 = vrcp.pop %v955
      %v960 = vcombine.low %v956, %v957
      %v962 = vunpack.c.l.s4 1983009808
      %v963 = vunpack.c.0.s8 %v962
      %v964 = vlaneseq
      %v965 = vshrl.u32 %v964, 7
      %v966 = vsub.s32 %v963, %v965
      %v967 = vrot.slane %v960, %v966
      %969 = vst [vmem:[#allocation8] sm:$0xf] %v967
    $region33: #{tpu_custom_call.1} parent=1 // pred_fallthru
      _
    // Predicated region
    $region34: #{tpu_custom_call.1} parent=1 // pred_check
      _
    $region35: #{tpu_custom_call.1} parent=1 // pred_check_branch
      %971 = sbr.rel (0) target = $region37
    $region36: #{tpu_custom_call.1} parent=1 // pred_region
      %s973 = ssub.s32 64, 64
      %974 = vsyncadd [#allocation5], %s973
      %s976 = sshll.u32 [#allocation8], 4
      %s977 = int_to_ptr.vmem [resolvable:$true] %s976
      %979 = dma.vmem_to_hbm [thread:$0]  %s977, 64, %s3, [#allocation5]
    $region37: #{tpu_custom_call.1} parent=1 // pred_fallthru
      _
    // Predicated region
    $region38: #{tpu_custom_call.1} parent=1 // pred_check
      _
    $region39: #{tpu_custom_call.1} parent=1 // pred_check_branch
      %981 = sbr.rel (0) target = $region41
    $region40: #{tpu_custom_call.1} parent=1 // pred_region
      %982 = dma.done [#allocation5], 64
    $region41: #{tpu_custom_call.1} parent=1 // pred_fallthru
      _
    %983 = vsyncpa [#allocation4], 1
    %984 = vsyncpa [#allocation5], 1
    %985 = vsyncpa [#allocation6], 1

</llo_original>
